<compile_context>
chip_gen: v6e
topology: v6e:2x2x1
jax: 0.10.0
libtpu: 0.0.40
codegen_flags: <defaults>
</compile_context>

<pallas_src>
import functools

import jax
import jax.numpy as jnp
from jax.experimental import pallas as pl
from jax.experimental.pallas import tpu as pltpu


def _dsf_kernel(x_ref, x1_ref, x2_ref, gw_ref, tap_ref, vrow_ref, out_ref, *,
                d, hw):
    """One grid step: `Bb` batch elements, full spatial extent.

    Layouts (channels-last, P = 128/d adjacent W pixels packed on lanes):
      x_ref, x2_ref, out_ref : (Bb, r/2, 2G, 128)   row m = (H%2)*G + W//P,
                                                    lane j = (W%P)*d + c
      x1_ref                 : (Bb, r/2, G, Q*d)    low-res stream, Q = P/2
      gw_ref                 : (4, 128, 128) block-diagonal 1x1-conv matrices
                               [w1 on x1u, w1 on x, w2 on x2, w2 on x]
      tap_ref                : (2G, 128) upconv taps (rows 0..G-1: ki=0,
                               rows G..2G-1: ki=1; lane pattern [kj0|kj1|...])
      vrow_ref               : (8, 128) rows = [b_up, b1, b2, 0...] lane-tiled
    """
    f32 = jnp.float32
    Bb, r2, twoG, L = x_ref.shape
    _, _, G, QD = x1_ref.shape
    Q = QD // d
    P = L // d
    N = Bb * r2 * twoG
    inv_hw = 1.0 / float(hw)

    xp = x_ref[...].astype(f32)                       # (Bb, r2, 2G, L)
    x2p = x2_ref[...].astype(f32)
    x1p = x1_ref[...].astype(f32)                     # (Bb, r2, G, Q*d)

    # ---- depthwise ConvTranspose2d(k=2, s=2, groups=dim), in-register -------
    # Lane-duplicate each d-channel block of the quarter-size stream (adjacent
    # output-W pixels share one low-res pixel; kj parity lives in the taps).
    parts = []
    for q in range(Q):
        blk = x1p[..., q * d:(q + 1) * d]
        parts.append(blk)
        parts.append(blk)
    x1w = jnp.concatenate(parts, axis=-1)             # (Bb, r2, G, L)
    # Row-duplicate into the (even-H | odd-H) halves of the 2G-row block.
    x1dup = jnp.concatenate([x1w, x1w], axis=2)       # (Bb, r2, 2G, L)
    taps = tap_ref[...].astype(f32)                   # (2G, L)
    bup = vrow_ref[0:1, :].astype(f32)                # (1, L)
    x1u = x1dup * taps + bup                          # upconv output, packed

    # ---- 1x1-conv gates: per-pixel channel reduction + broadcast-back as one
    #      MXU matmul per term against block-diagonal weight matrices ---------
    xf = xp.reshape(N, L)
    x2f = x2p.reshape(N, L)
    x1uf = x1u.reshape(N, L)
    b1row = vrow_ref[1:2, :].astype(f32)              # (1, L)
    b2row = vrow_ref[2:3, :].astype(f32)

    def gdot(a, i):
        return jnp.dot(a, gw_ref[i].astype(f32), preferred_element_type=f32)

    s1 = jax.nn.sigmoid(gdot(x1uf, 0) + gdot(xf, 1) + b1row)   # per-pixel gate
    s2 = jax.nn.sigmoid(gdot(x2f, 2) + gdot(xf, 3) + b2row)
    x1g = x1uf * s1
    x2g = x2f * s2

    # ---- AdaptiveAvgPool2d((1,1)) + 2-way channel softmax -------------------
    # softmax([mean1, mean2])[0] == sigmoid(mean1 - mean2): only the pooled
    # DIFFERENCE is needed.  Sum the row axis first (VPU adds + one sublane
    # reduce), then (P-1) circular lane rolls sum the P pixel segments per
    # channel, leaving the result broadcast across segments.
    diff = (x1g - x2g).reshape(Bb, r2 * twoG, L)      # (Bb, M, L)
    x2g3 = x2g.reshape(Bb, r2 * twoG, L)
    dq = jnp.sum(diff, axis=1, keepdims=True)         # (Bb, 1, L)
    tot = dq
    for k in range(1, P):
        tot = tot + pltpu.roll(dq, k * d, axis=2)
    c1 = jax.nn.sigmoid(tot * inv_hw)                 # (Bb, 1, L)

    # c1*x1g + (1-c1)*x2g  ==  x2g + c1*(x1g - x2g)
    out3 = x2g3 + c1 * diff
    out_ref[...] = out3.reshape(Bb, r2, twoG, L).astype(out_ref.dtype)


def _vmem_capacity():
    try:
        return int(pltpu.get_tpu_info().vmem_capacity_bytes)
    except Exception:
        return 64 * 1024 * 1024          # conservative floor (v7x per-TC VMEM)


def _pick_batch_block(B, hw, d, vmem_cap):
    """Largest divisor of B whose per-step f32 working set fits the budget,
    capped at B//2 so the parallel grid axis keeps both v7x TCs busy."""
    per_b = hw * d * 4 * 20              # ~resident f32 planes per batch elem
    cap = max(1, int(vmem_cap * 0.55) // max(per_b, 1))
    if B >= 2:
        cap = min(cap, B // 2)           # >=2 parallel steps (v7x megacore);
                                         # costs one ~0.35us step on v5e/v6e.
    bb = max(1, min(B, cap))
    while B % bb:
        bb -= 1
    return bb


def dsf_forward(x, x1, x2, params, r):
    B, HW, d = x.shape
    r2 = r // 2
    assert r % 2 == 0 and HW == r * r
    assert x1.shape == (B, r2 * r2, d) and x2.shape == (B, HW, d)
    assert 128 % d == 0 and d <= 64, "dim must divide 128 and be <= 64"
    L = 128
    P = L // d                  # full-res pixels per 128-lane group
    Q = P // 2                  # low-res pixels per x1 lane group
    G = r // P                  # lane groups per image row
    assert r % P == 0, "input_resolution must be a multiple of 128//dim"

    w_up = params["w_up"].astype(jnp.float32)        # (d, 2, 2)
    b_up = params["b_up"].astype(jnp.float32)        # (d,)
    w1 = params["w1"].astype(jnp.float32)            # (2d,)
    w2 = params["w2"].astype(jnp.float32)            # (2d,)
    b1, b2 = params["b1"], params["b2"]

    # ---- free (metadata-only) relayouts: pack P adjacent W pixels on lanes --
    xr = x.reshape(B, r2, 2 * G, L)
    x2r = x2.reshape(B, r2, 2 * G, L)
    x1r = x1.reshape(B, r2, G, Q * d)

    # ---- parameters pre-tiled to full lane width in the wrapper -------------
    eyeP = jnp.eye(P, dtype=jnp.float32)

    def block_diag(wvec):       # (d,) -> (128,128): sum-over-segment + bcast
        return jnp.kron(eyeP, jnp.broadcast_to(wvec[:, None], (d, d)))

    gw = jnp.stack([block_diag(w1[:d]), block_diag(w1[d:]),
                    block_diag(w2[:d]), block_diag(w2[d:])], axis=0)  # (4,L,L)

    tap = jnp.transpose(w_up, (1, 2, 0))                 # (ki, kj, d)
    tap_lane = jnp.tile(tap.reshape(2, 2 * d), (1, Q))   # (2, L): [kj0|kj1|..]
    taprows = jnp.concatenate(
        [jnp.broadcast_to(tap_lane[0], (G, L)),
         jnp.broadcast_to(tap_lane[1], (G, L))], axis=0)  # (2G, L)
    vrow = jnp.zeros((8, L), jnp.float32)
    vrow = vrow.at[0].set(jnp.tile(b_up, P))
    vrow = vrow.at[1].set(jnp.full((L,), b1, jnp.float32))
    vrow = vrow.at[2].set(jnp.full((L,), b2, jnp.float32))

    vmem_cap = _vmem_capacity()
    Bb = _pick_batch_block(B, HW, d, vmem_cap)
    grid = (B // Bb,)

    data_spec = pl.BlockSpec((Bb, r2, 2 * G, L), lambda b: (b, 0, 0, 0))
    x1_spec = pl.BlockSpec((Bb, r2, G, Q * d), lambda b: (b, 0, 0, 0))
    gw_spec = pl.BlockSpec((4, L, L), lambda b: (0, 0, 0))
    tap_spec = pl.BlockSpec((2 * G, L), lambda b: (0, 0))
    vrow_spec = pl.BlockSpec((8, L), lambda b: (0, 0))

    out = pl.pallas_call(
        functools.partial(_dsf_kernel, d=d, hw=HW),
        out_shape=jax.ShapeDtypeStruct((B, r2, 2 * G, L), x.dtype),
        grid=grid,
        in_specs=[data_spec, x1_spec, data_spec, gw_spec, tap_spec, vrow_spec],
        out_specs=data_spec,
        compiler_params=pltpu.CompilerParams(
            dimension_semantics=("parallel",),
            vmem_limit_bytes=min(vmem_cap * 3 // 4, 96 * 1024 * 1024)),
    )(xr, x1r, x2r, gw, taprows, vrow)
    return out.reshape(B, HW, d)


def dsf_reference(x, x1, x2, params, r):
    """Pure-JAX mirror of the PyTorch forward (NCHW internally)."""
    B, HW, d = x.shape
    r2 = r // 2
    w_up, b_up = params["w_up"], params["b_up"]
    w1, b1 = params["w1"], params["b1"]
    w2, b2 = params["w2"], params["b2"]

    x1_img = x1.reshape(B, r2, r2, d).transpose(0, 3, 1, 2)   # b d h w
    x_img = x.reshape(B, r, r, d).transpose(0, 3, 1, 2)
    x2_img = x2.reshape(B, r, r, d).transpose(0, 3, 1, 2)

    # depthwise transposed conv k=2 s=2
    t = x1_img[:, :, :, None, :, None] * w_up[None, :, None, :, None, :]
    up = t.reshape(B, d, r, r) + b_up[None, :, None, None]

    s1 = jax.nn.sigmoid(
        jnp.einsum('bchw,c->bhw', jnp.concatenate([up, x_img], 1), w1) + b1)[:, None]
    x1g = up * s1
    s2 = jax.nn.sigmoid(
        jnp.einsum('bchw,c->bhw', jnp.concatenate([x2_img, x_img], 1), w2) + b2)[:, None]
    x2g = x2_img * s2

    p1 = x1g.mean(axis=(2, 3))
    p2 = x2g.mean(axis=(2, 3))
    c = jax.nn.softmax(jnp.stack([p1, p2], axis=-1), axis=-1)
    c1 = c[..., 0][:, :, None, None]
    c2 = c[..., 1][:, :, None, None]
    out = c1 * x1g + c2 * x2g
    return out.transpose(0, 2, 3, 1).reshape(B, HW, d)


if __name__ == "__main__":
    B, dim, r = 2, 32, 16
    key = jax.random.PRNGKey(0)
    keys = jax.random.split(key, 9)
    params = dict(
        w_up=jax.random.normal(keys[0], (dim, 2, 2), jnp.float32) * 0.1,
        b_up=jax.random.normal(keys[1], (dim,), jnp.float32) * 0.1,
        w1=jax.random.normal(keys[2], (2 * dim,), jnp.float32) * 0.1,
        b1=jax.random.normal(keys[3], (), jnp.float32) * 0.1,
        w2=jax.random.normal(keys[4], (2 * dim,), jnp.float32) * 0.1,
        b2=jax.random.normal(keys[5], (), jnp.float32) * 0.1,
    )
    x = jax.random.normal(keys[6], (B, r * r, dim), jnp.float32)
    x1 = jax.random.normal(keys[7], (B, (r // 2) ** 2, dim), jnp.float32)
    x2 = jax.random.normal(keys[8], (B, r * r, dim), jnp.float32)

    out = dsf_forward(x, x1, x2, params, r)
    jax.block_until_ready(out)

    ref = dsf_reference(x, x1, x2, params, r)
    assert out.shape == (B, r * r, dim)
    # Tolerance accounts for the default-precision MXU matmuls in the gate path
    # (bf16-pass rounding); any structural/layout bug produces O(0.1+) errors.
    assert jnp.allclose(out, ref, atol=2e-3, rtol=2e-3), "mismatch vs reference"
    print("KERNEL_OK")
</pallas_src>

<mosaic_0001>
module attributes {stable_mosaic.version = 11 : i64} {
  func.func @_dsf_kernel(%arg0: i32, %arg1: memref<1x8x8x128xf32, #tpu.memory_space<vmem>>, %arg2: memref<1x8x4x64xf32, #tpu.memory_space<vmem>>, %arg3: memref<1x8x8x128xf32, #tpu.memory_space<vmem>>, %arg4: memref<4x128x128xf32, #tpu.memory_space<vmem>>, %arg5: memref<8x128xf32, #tpu.memory_space<vmem>>, %arg6: memref<8x128xf32, #tpu.memory_space<vmem>>, %arg7: memref<1x8x8x128xf32, #tpu.memory_space<vmem>>) attributes {dimension_semantics = [#tpu.dimension_semantics<parallel>], iteration_bounds = array<i64: 2>, scalar_prefetch = 0 : i64, scratch_operands = 0 : i64, tpu.core_type = #tpu.core_type<tc>, window_params = [{transform_indices = @transform_0, window_bounds = array<i64: 1, 8, 8, 128>}, {transform_indices = @transform_1, window_bounds = array<i64: 1, 8, 4, 64>}, {transform_indices = @transform_2, window_bounds = array<i64: 1, 8, 8, 128>}, {pipeline_mode = #tpu.pipeline_mode<synchronous>, transform_indices = @transform_3, window_bounds = array<i64: 4, 128, 128>}, {pipeline_mode = #tpu.pipeline_mode<synchronous>, transform_indices = @transform_4, window_bounds = array<i64: 8, 128>}, {pipeline_mode = #tpu.pipeline_mode<synchronous>, transform_indices = @transform_5, window_bounds = array<i64: 8, 128>}, {transform_indices = @transform_6, window_bounds = array<i64: 1, 8, 8, 128>}]} {
    %c0 = arith.constant 0 : index
    %c0_0 = arith.constant 0 : index
    %c0_1 = arith.constant 0 : index
    %c0_2 = arith.constant 0 : index
    %0 = vector.load %arg1[%c0, %c0_0, %c0_1, %c0_2] : memref<1x8x8x128xf32, #tpu.memory_space<vmem>>, vector<1x8x8x128xf32>
    %c0_3 = arith.constant 0 : index
    %c0_4 = arith.constant 0 : index
    %c0_5 = arith.constant 0 : index
    %c0_6 = arith.constant 0 : index
    %1 = vector.load %arg3[%c0_3, %c0_4, %c0_5, %c0_6] : memref<1x8x8x128xf32, #tpu.memory_space<vmem>>, vector<1x8x8x128xf32>
    %c0_7 = arith.constant 0 : index
    %c0_8 = arith.constant 0 : index
    %c0_9 = arith.constant 0 : index
    %c0_10 = arith.constant 0 : index
    %2 = vector.load %arg2[%c0_7, %c0_8, %c0_9, %c0_10] : memref<1x8x4x64xf32, #tpu.memory_space<vmem>>, vector<1x8x4x64xf32>
    %3 = vector.extract_strided_slice %2 {offsets = [0, 0, 0, 0], sizes = [1, 8, 4, 32], strides = [1, 1, 1, 1]} : vector<1x8x4x64xf32> to vector<1x8x4x32xf32>
    %4 = vector.extract_strided_slice %2 {offsets = [0, 0, 0, 32], sizes = [1, 8, 4, 32], strides = [1, 1, 1, 1]} : vector<1x8x4x64xf32> to vector<1x8x4x32xf32>
    %5 = tpu.concatenate %3, %3, %4, %4 in 3 : vector<1x8x4x32xf32>, vector<1x8x4x32xf32>, vector<1x8x4x32xf32>, vector<1x8x4x32xf32> -> vector<1x8x4x128xf32>
    %6 = tpu.concatenate %5, %5 in 2 : vector<1x8x4x128xf32>, vector<1x8x4x128xf32> -> vector<1x8x8x128xf32>
    %c0_11 = arith.constant 0 : index
    %c0_12 = arith.constant 0 : index
    %7 = vector.load %arg5[%c0_11, %c0_12] : memref<8x128xf32, #tpu.memory_space<vmem>>, vector<8x128xf32>
    %c0_13 = arith.constant 0 : index
    %c0_14 = arith.constant 0 : index
    %8 = vector.load %arg6[%c0_13, %c0_14] : memref<8x128xf32, #tpu.memory_space<vmem>>, vector<1x128xf32>
    %9 = vector.shape_cast %7 : vector<8x128xf32> to vector<1x1x8x128xf32>
    %10 = vector.broadcast %9 : vector<1x1x8x128xf32> to vector<1x8x8x128xf32>
    %11 = arith.mulf %6, %10 : vector<1x8x8x128xf32>
    %12 = vector.shape_cast %8 : vector<1x128xf32> to vector<1x1x1x128xf32>
    %13 = vector.broadcast %12 : vector<1x1x1x128xf32> to vector<1x8x8x128xf32>
    %14 = arith.addf %11, %13 : vector<1x8x8x128xf32>
    %15 = vector.shape_cast %0 : vector<1x8x8x128xf32> to vector<64x128xf32>
    %16 = vector.shape_cast %1 : vector<1x8x8x128xf32> to vector<64x128xf32>
    %17 = vector.shape_cast %14 : vector<1x8x8x128xf32> to vector<64x128xf32>
    %c1 = arith.constant 1 : index
    %c0_15 = arith.constant 0 : index
    %18 = vector.load %arg6[%c1, %c0_15] : memref<8x128xf32, #tpu.memory_space<vmem>>, vector<1x128xf32>
    %c2 = arith.constant 2 : index
    %c0_16 = arith.constant 0 : index
    %19 = vector.load %arg6[%c2, %c0_16] : memref<8x128xf32, #tpu.memory_space<vmem>>, vector<1x128xf32>
    %c0_17 = arith.constant 0 : index
    %c0_18 = arith.constant 0 : index
    %c0_19 = arith.constant 0 : index
    %20 = vector.load %arg4[%c0_17, %c0_18, %c0_19] : memref<4x128x128xf32, #tpu.memory_space<vmem>>, vector<1x128x128xf32>
    %21 = vector.shape_cast %20 : vector<1x128x128xf32> to vector<128x128xf32>
    %cst = arith.constant dense<0.000000e+00> : vector<64x128xf32>
    %22 = tpu.matmul %17, %21, %cst {dimension_numbers = #tpu.dot_dimension_numbers<[1], [0], [0], [1], [0, 0, 1, 1], [], []>} : vector<64x128xf32>, vector<128x128xf32>, vector<64x128xf32> -> vector<64x128xf32>
    %c1_20 = arith.constant 1 : index
    %c0_21 = arith.constant 0 : index
    %c0_22 = arith.constant 0 : index
    %23 = vector.load %arg4[%c1_20, %c0_21, %c0_22] : memref<4x128x128xf32, #tpu.memory_space<vmem>>, vector<1x128x128xf32>
    %24 = vector.shape_cast %23 : vector<1x128x128xf32> to vector<128x128xf32>
    %cst_23 = arith.constant dense<0.000000e+00> : vector<64x128xf32>
    %25 = tpu.matmul %15, %24, %cst_23 {dimension_numbers = #tpu.dot_dimension_numbers<[1], [0], [0], [1], [0, 0, 1, 1], [], []>} : vector<64x128xf32>, vector<128x128xf32>, vector<64x128xf32> -> vector<64x128xf32>
    %26 = arith.addf %22, %25 : vector<64x128xf32>
    %27 = vector.broadcast %18 : vector<1x128xf32> to vector<64x128xf32>
    %28 = arith.addf %26, %27 : vector<64x128xf32>
    %29 = arith.negf %28 : vector<64x128xf32>
    %30 = math.exp %29 : vector<64x128xf32>
    %cst_24 = arith.constant 1.000000e+00 : f32
    %31 = vector.broadcast %cst_24 : f32 to vector<64x128xf32>
    %32 = arith.addf %31, %30 : vector<64x128xf32>
    %33 = arith.divf %31, %32 : vector<64x128xf32>
    %c2_25 = arith.constant 2 : index
    %c0_26 = arith.constant 0 : index
    %c0_27 = arith.constant 0 : index
    %34 = vector.load %arg4[%c2_25, %c0_26, %c0_27] : memref<4x128x128xf32, #tpu.memory_space<vmem>>, vector<1x128x128xf32>
    %35 = vector.shape_cast %34 : vector<1x128x128xf32> to vector<128x128xf32>
    %cst_28 = arith.constant dense<0.000000e+00> : vector<64x128xf32>
    %36 = tpu.matmul %16, %35, %cst_28 {dimension_numbers = #tpu.dot_dimension_numbers<[1], [0], [0], [1], [0, 0, 1, 1], [], []>} : vector<64x128xf32>, vector<128x128xf32>, vector<64x128xf32> -> vector<64x128xf32>
    %c3 = arith.constant 3 : index
    %c0_29 = arith.constant 0 : index
    %c0_30 = arith.constant 0 : index
    %37 = vector.load %arg4[%c3, %c0_29, %c0_30] : memref<4x128x128xf32, #tpu.memory_space<vmem>>, vector<1x128x128xf32>
    %38 = vector.shape_cast %37 : vector<1x128x128xf32> to vector<128x128xf32>
    %cst_31 = arith.constant dense<0.000000e+00> : vector<64x128xf32>
    %39 = tpu.matmul %15, %38, %cst_31 {dimension_numbers = #tpu.dot_dimension_numbers<[1], [0], [0], [1], [0, 0, 1, 1], [], []>} : vector<64x128xf32>, vector<128x128xf32>, vector<64x128xf32> -> vector<64x128xf32>
    %40 = arith.addf %36, %39 : vector<64x128xf32>
    %41 = vector.broadcast %19 : vector<1x128xf32> to vector<64x128xf32>
    %42 = arith.addf %40, %41 : vector<64x128xf32>
    %43 = arith.negf %42 : vector<64x128xf32>
    %44 = math.exp %43 : vector<64x128xf32>
    %cst_32 = arith.constant 1.000000e+00 : f32
    %45 = vector.broadcast %cst_32 : f32 to vector<64x128xf32>
    %46 = arith.addf %45, %44 : vector<64x128xf32>
    %47 = arith.divf %45, %46 : vector<64x128xf32>
    %48 = arith.mulf %17, %33 : vector<64x128xf32>
    %49 = arith.mulf %16, %47 : vector<64x128xf32>
    %50 = arith.subf %48, %49 : vector<64x128xf32>
    %51 = vector.shape_cast %50 : vector<64x128xf32> to vector<1x64x128xf32>
    %52 = vector.shape_cast %49 : vector<64x128xf32> to vector<1x64x128xf32>
    %cst_33 = arith.constant dense<0.000000e+00> : vector<1x128xf32>
    %53 = vector.multi_reduction <add>, %51, %cst_33 [1] : vector<1x64x128xf32> to vector<1x128xf32>
    %54 = vector.shape_cast %53 : vector<1x128xf32> to vector<1x1x128xf32>
    %c32_i32 = arith.constant 32 : i32
    %55 = tpu.dynamic_rotate %54 by %c32_i32 dim 2 : vector<1x1x128xf32>, i32 -> vector<1x1x128xf32>
    %56 = arith.addf %54, %55 : vector<1x1x128xf32>
    %c64_i32 = arith.constant 64 : i32
    %57 = tpu.dynamic_rotate %54 by %c64_i32 dim 2 : vector<1x1x128xf32>, i32 -> vector<1x1x128xf32>
    %58 = arith.addf %56, %57 : vector<1x1x128xf32>
    %c96_i32 = arith.constant 96 : i32
    %59 = tpu.dynamic_rotate %54 by %c96_i32 dim 2 : vector<1x1x128xf32>, i32 -> vector<1x1x128xf32>
    %60 = arith.addf %58, %59 : vector<1x1x128xf32>
    %cst_34 = arith.constant 3.906250e-03 : f32
    %61 = vector.broadcast %cst_34 : f32 to vector<1x1x128xf32>
    %62 = arith.mulf %60, %61 : vector<1x1x128xf32>
    %63 = arith.negf %62 : vector<1x1x128xf32>
    %64 = math.exp %63 : vector<1x1x128xf32>
    %cst_35 = arith.constant 1.000000e+00 : f32
    %65 = vector.broadcast %cst_35 : f32 to vector<1x1x128xf32>
    %66 = arith.addf %65, %64 : vector<1x1x128xf32>
    %67 = arith.divf %65, %66 : vector<1x1x128xf32>
    %68 = vector.broadcast %67 : vector<1x1x128xf32> to vector<1x64x128xf32>
    %69 = arith.mulf %68, %51 : vector<1x64x128xf32>
    %70 = arith.addf %52, %69 : vector<1x64x128xf32>
    %71 = vector.shape_cast %70 : vector<1x64x128xf32> to vector<1x8x8x128xf32>
    %c0_36 = arith.constant 0 : index
    %c0_37 = arith.constant 0 : index
    %c0_38 = arith.constant 0 : index
    %c0_39 = arith.constant 0 : index
    %72 = vector.load %arg7[%c0_36, %c0_37, %c0_38, %c0_39] : memref<1x8x8x128xf32, #tpu.memory_space<vmem>>, vector<1x8x8x128xf32>
    tpu.vector_store %arg7[%c0_36, %c0_37, %c0_38, %c0_39], %71 {strides = array<i32>} : memref<1x8x8x128xf32, #tpu.memory_space<vmem>>, vector<1x8x8x128xf32>,
    return
  }
  func.func @transform_0(%arg0: i32) -> (i32, i32, i32, i32) {
    %c0_i32 = arith.constant 0 : i32
    %c0_i32_0 = arith.constant 0 : i32
    %c0_i32_1 = arith.constant 0 : i32
    %c0_i32_2 = arith.constant 0 : i32
    return %arg0, %c0_i32, %c0_i32_0, %c0_i32_1 : i32, i32, i32, i32
  }
  func.func @transform_1(%arg0: i32) -> (i32, i32, i32, i32) {
    %c0_i32 = arith.constant 0 : i32
    %c0_i32_0 = arith.constant 0 : i32
    %c0_i32_1 = arith.constant 0 : i32
    %c0_i32_2 = arith.constant 0 : i32
    return %arg0, %c0_i32, %c0_i32_0, %c0_i32_1 : i32, i32, i32, i32
  }
  func.func @transform_2(%arg0: i32) -> (i32, i32, i32, i32) {
    %c0_i32 = arith.constant 0 : i32
    %c0_i32_0 = arith.constant 0 : i32
    %c0_i32_1 = arith.constant 0 : i32
    %c0_i32_2 = arith.constant 0 : i32
    return %arg0, %c0_i32, %c0_i32_0, %c0_i32_1 : i32, i32, i32, i32
  }
  func.func @transform_3(%arg0: i32) -> (i32, i32, i32) {
    %c0_i32 = arith.constant 0 : i32
    %c0_i32_0 = arith.constant 0 : i32
    %c0_i32_1 = arith.constant 0 : i32
    %c0_i32_2 = arith.constant 0 : i32
    return %c0_i32, %c0_i32_0, %c0_i32_1 : i32, i32, i32
  }
  func.func @transform_4(%arg0: i32) -> (i32, i32) {
    %c0_i32 = arith.constant 0 : i32
    %c0_i32_0 = arith.constant 0 : i32
    %c0_i32_1 = arith.constant 0 : i32
    return %c0_i32, %c0_i32_0 : i32, i32
  }
  func.func @transform_5(%arg0: i32) -> (i32, i32) {
    %c0_i32 = arith.constant 0 : i32
    %c0_i32_0 = arith.constant 0 : i32
    %c0_i32_1 = arith.constant 0 : i32
    return %c0_i32, %c0_i32_0 : i32, i32
  }
  func.func @transform_6(%arg0: i32) -> (i32, i32, i32, i32) {
    %c0_i32 = arith.constant 0 : i32
    %c0_i32_0 = arith.constant 0 : i32
    %c0_i32_1 = arith.constant 0 : i32
    %c0_i32_2 = arith.constant 0 : i32
    return %arg0, %c0_i32, %c0_i32_0, %c0_i32_1 : i32, i32, i32, i32
  }
}

</mosaic_0001>

<llo_original>
// kernel: tpu_custom_call.1
$region0: #{tpu_custom_call.1}
  #allocation0 [shape = 'u32[]', space=smem, size = 0x4, offset = 0x4, fixed_abs, tag = 'smem constant byte address 0x4 - core index']
  #allocation1 [shape = 'u32[144,128]{1,0:T(1,128)}', space=vmem, size = 0x12000, scoped, tag = 'internal scratch']
  %s0 = inlined_call_operand.hbm [shape: f32[2,8,8,128], index: 0, kind: input, shape index: {}]
  %s1 = inlined_call_operand.hbm [shape: f32[2,8,4,64], index: 1, kind: input, shape index: {}]
  %s2 = inlined_call_operand.hbm [shape: f32[2,8,8,128], index: 2, kind: input, shape index: {}]
  %s3 = inlined_call_operand.hbm [shape: f32[4,128,128], index: 3, kind: input, shape index: {}]
  %s4 = inlined_call_operand.hbm [shape: f32[8,128], index: 4, kind: input, shape index: {}]
  %s5 = inlined_call_operand.vmem [shape: f32[8,128], index: 5, kind: input, shape index: {}]
  %s6 = inlined_call_operand.hbm [shape: f32[2,8,8,128], index: 6, kind: output, shape index: {}]
  %s7 = sld [smem:[#allocation0]]
  $region77: #{tpu_custom_call.1} parent=0
    _
  %s9 = ssub.s32 1, %s7
  %s10 = scalar_select 0, %s9, %s7
  $region1: #{tpu_custom_call.1} parent=0
    #allocation2 [shape = 'u8[65536]{0}', space=vmem, size = 0x10000, scoped, tag = 'input window, operand 0']
    #allocation3 [shape = 's32[2]{0}', space=sflag, size = 0x8, scoped, tag = 'scoped memory for tpu_custom_call.1']
    #allocation4 [shape = 's32[2]{0}', space=sflag, size = 0x8, scoped, tag = 'scoped memory for tpu_custom_call.1']
    #allocation5 [shape = 'u8[32768]{0}', space=vmem, size = 0x8000, scoped, tag = 'input window, operand 1']
    #allocation6 [shape = 's32[2]{0}', space=sflag, size = 0x8, scoped, tag = 'scoped memory for tpu_custom_call.1']
    #allocation7 [shape = 'u8[65536]{0}', space=vmem, size = 0x10000, scoped, tag = 'input window, operand 2']
    #allocation8 [shape = 'u8[262144]{0}', space=vmem, size = 0x40000, scoped, tag = 'input window, operand 3, single buffered']
    #allocation9 [shape = 's32[1]{0}', space=sflag, size = 0x4, scoped, tag = 'scoped memory for tpu_custom_call.1']
    #allocation10 [shape = 'u8[4096]{0}', space=vmem, size = 0x1000, scoped, tag = 'input window, operand 4, single buffered']
    #allocation11 [shape = 'u8[65536]{0}', space=vmem, size = 0x10000, scoped, tag = 'output window, operand 0']
    %11 = vsyncpa [#allocation3], 0
    %s12 = scalar_lea.sflag [#allocation3], 1
    %13 = vsyncpa %s12, 0
    %14 = vsyncpa [#allocation6], 0
    %s15 = scalar_lea.sflag [#allocation6], 1
    %16 = vsyncpa %s15, 0
    %17 = vsyncpa [#allocation9], 0
    %18 = vsyncpa [#allocation4], 0
    %s19 = scalar_lea.sflag [#allocation4], 1
    %20 = vsyncpa %s19, 0
    loop: start=0, step=1, limit=4
    $region2: #{tpu_custom_call.1} parent=1 // loop_pre_header
      _
    $region3: #{tpu_custom_call.1} parent=1 // loop_header
      %s22 = sphi 0, %s26
      %p23 = scmp.ge.s32.totalorder %s22, 4
      %s32 = sphi 0, %s34
      %s35 = sphi 0, %s32
      %s36 = sphi 0, %s35
      %s52 = sphi 0, %s36
      %s58 = sphi 0, %s60
      %s61 = sphi 0, %s58
      %s62 = sphi 0, %s61
      %s78 = sphi 0, %s62
      %s84 = sphi 0, %s86
      %s87 = sphi 0, %s84
      %s88 = sphi 0, %s87
      %s104 = sphi 0, %s88
      %s108 = sphi 0, %s108
      %s110 = sphi 0, %s108
      %s111 = sphi 0, %s110
      %s125 = sphi 0, %s111
      %s129 = sphi 0, %s129
      %s131 = sphi 0, %s129
      %s132 = sphi 0, %s131
      %s146 = sphi 0, %s132
      %s150 = sphi 0, %s150
      %s152 = sphi 0, %s150
      %s153 = sphi 0, %s152
      %s167 = sphi 0, %s153
      %s173 = sphi 0, %s175
      %s176 = sphi 0, %s173
      %s177 = sphi 0, %s176
      %s193 = sphi 0, %s177
    $region4: #{tpu_custom_call.1} parent=1 // loop_header_branch
      %25 = sbr.rel (%p23) target = $region8
    $region5: #{tpu_custom_call.1} parent=1 // loop_body
      %s27 = ssub.s32 %s22, 1
      %s28 = ssub.s32 %s22, 2
      %s29 = sadd.s32 %s22, 1
      %s30 = ssub.s32 %s22, %s29
      %p31 = scmp.eq.s32.totalorder %s30, 0
      %s33 = sadd.s32 %s32, 1
      %s34 = scalar_select %p31, %s32, %s33
      %p37 = pneg %p31
      %p38 = scmp.eq.s32.totalorder %s22, 1
      %p39 = por %p37, %p38
      %p40 = scmp.ne.s32.totalorder %s32, %s35
      %p41 = scmp.eq.s32.totalorder %s22, 0
      %p42 = por %p40, %p41
      %p43 = scmp.ne.s32.totalorder %s32, %s35
      %p44 = scmp.eq.s32.totalorder %s27, 1
      %p45 = por %p43, %p44
      %p46 = scmp.ne.s32.totalorder %s35, %s36
      %p47 = scmp.eq.s32.totalorder %s27, 0
      %p48 = por %p46, %p47
      %p49 = scmp.ne.s32.totalorder %s35, %s36
      %p50 = scmp.eq.s32.totalorder %s28, 1
      %p51 = por %p49, %p50
      %p53 = scmp.ne.s32.totalorder %s36, %s52
      %p54 = scmp.eq.s32.totalorder %s28, 0
      %p55 = por %p53, %p54
      %s56 = ssub.s32 %s22, %s29
      %p57 = scmp.eq.s32.totalorder %s56, 0
      %s59 = sadd.s32 %s58, 1
      %s60 = scalar_select %p57, %s58, %s59
      %p63 = pneg %p57
      %p64 = scmp.eq.s32.totalorder %s22, 1
      %p65 = por %p63, %p64
      %p66 = scmp.ne.s32.totalorder %s58, %s61
      %p67 = scmp.eq.s32.totalorder %s22, 0
      %p68 = por %p66, %p67
      %p69 = scmp.ne.s32.totalorder %s58, %s61
      %p70 = scmp.eq.s32.totalorder %s27, 1
      %p71 = por %p69, %p70
      %p72 = scmp.ne.s32.totalorder %s61, %s62
      %p73 = scmp.eq.s32.totalorder %s27, 0
      %p74 = por %p72, %p73
      %p75 = scmp.ne.s32.totalorder %s61, %s62
      %p76 = scmp.eq.s32.totalorder %s28, 1
      %p77 = por %p75, %p76
      %p79 = scmp.ne.s32.totalorder %s62, %s78
      %p80 = scmp.eq.s32.totalorder %s28, 0
      %p81 = por %p79, %p80
      %s82 = ssub.s32 %s22, %s29
      %p83 = scmp.eq.s32.totalorder %s82, 0
      %s85 = sadd.s32 %s84, 1
      %s86 = scalar_select %p83, %s84, %s85
      %p89 = pneg %p83
      %p90 = scmp.eq.s32.totalorder %s22, 1
      %p91 = por %p89, %p90
      %p92 = scmp.ne.s32.totalorder %s84, %s87
      %p93 = scmp.eq.s32.totalorder %s22, 0
      %p94 = por %p92, %p93
      %p95 = scmp.ne.s32.totalorder %s84, %s87
      %p96 = scmp.eq.s32.totalorder %s27, 1
      %p97 = por %p95, %p96
      %p98 = scmp.ne.s32.totalorder %s87, %s88
      %p99 = scmp.eq.s32.totalorder %s27, 0
      %p100 = por %p98, %p99
      %p101 = scmp.ne.s32.totalorder %s87, %s88
      %p102 = scmp.eq.s32.totalorder %s28, 1
      %p103 = por %p101, %p102
      %p105 = scmp.ne.s32.totalorder %s88, %s104
      %p106 = scmp.eq.s32.totalorder %s28, 0
      %p107 = por %p105, %p106
      %s109 = sadd.s32 %s108, 1
      %p112 = scmp.eq.s32.totalorder %s22, 1
      %p113 = scmp.ne.s32.totalorder %s108, %s110
      %p114 = scmp.eq.s32.totalorder %s22, 0
      %p115 = por %p113, %p114
      %p116 = scmp.ne.s32.totalorder %s108, %s110
      %p117 = scmp.eq.s32.totalorder %s27, 1
      %p118 = por %p116, %p117
      %p119 = scmp.ne.s32.totalorder %s110, %s111
      %p120 = scmp.eq.s32.totalorder %s27, 0
      %p121 = por %p119, %p120
      %p122 = scmp.ne.s32.totalorder %s110, %s111
      %p123 = scmp.eq.s32.totalorder %s28, 1
      %p124 = por %p122, %p123
      %p126 = scmp.ne.s32.totalorder %s111, %s125
      %p127 = scmp.eq.s32.totalorder %s28, 0
      %p128 = por %p126, %p127
      %s130 = sadd.s32 %s129, 1
      %p133 = scmp.eq.s32.totalorder %s22, 1
      %p134 = scmp.ne.s32.totalorder %s129, %s131
      %p135 = scmp.eq.s32.totalorder %s22, 0
      %p136 = por %p134, %p135
      %p137 = scmp.ne.s32.totalorder %s129, %s131
      %p138 = scmp.eq.s32.totalorder %s27, 1
      %p139 = por %p137, %p138
      %p140 = scmp.ne.s32.totalorder %s131, %s132
      %p141 = scmp.eq.s32.totalorder %s27, 0
      %p142 = por %p140, %p141
      %p143 = scmp.ne.s32.totalorder %s131, %s132
      %p144 = scmp.eq.s32.totalorder %s28, 1
      %p145 = por %p143, %p144
      %p147 = scmp.ne.s32.totalorder %s132, %s146
      %p148 = scmp.eq.s32.totalorder %s28, 0
      %p149 = por %p147, %p148
      %s151 = sadd.s32 %s150, 1
      %p154 = scmp.eq.s32.totalorder %s22, 1
      %p155 = scmp.ne.s32.totalorder %s150, %s152
      %p156 = scmp.eq.s32.totalorder %s22, 0
      %p157 = por %p155, %p156
      %p158 = scmp.ne.s32.totalorder %s150, %s152
      %p159 = scmp.eq.s32.totalorder %s27, 1
      %p160 = por %p158, %p159
      %p161 = scmp.ne.s32.totalorder %s152, %s153
      %p162 = scmp.eq.s32.totalorder %s27, 0
      %p163 = por %p161, %p162
      %p164 = scmp.ne.s32.totalorder %s152, %s153
      %p165 = scmp.eq.s32.totalorder %s28, 1
      %p166 = por %p164, %p165
      %p168 = scmp.ne.s32.totalorder %s153, %s167
      %p169 = scmp.eq.s32.totalorder %s28, 0
      %p170 = por %p168, %p169
      %s171 = ssub.s32 %s22, %s29
      %p172 = scmp.eq.s32.totalorder %s171, 0
      %s174 = sadd.s32 %s173, 1
      %s175 = scalar_select %p172, %s173, %s174
      %p178 = pneg %p172
      %p179 = scmp.eq.s32.totalorder %s22, 1
      %p180 = por %p178, %p179
      %p181 = scmp.ne.s32.totalorder %s173, %s176
      %p182 = scmp.eq.s32.totalorder %s22, 0
      %p183 = por %p181, %p182
      %p184 = scmp.ne.s32.totalorder %s173, %s176
      %p185 = scmp.eq.s32.totalorder %s27, 1
      %p186 = por %p184, %p185
      %p187 = scmp.ne.s32.totalorder %s176, %s177
      %p188 = scmp.eq.s32.totalorder %s27, 0
      %p189 = por %p187, %p188
      %p190 = scmp.ne.s32.totalorder %s176, %s177
      %p191 = scmp.eq.s32.totalorder %s28, 1
      %p192 = por %p190, %p191
      %p194 = scmp.ne.s32.totalorder %s177, %s193
      %p195 = scmp.eq.s32.totalorder %s28, 0
      %p196 = por %p194, %p195
      %p197 = scmp.le.s32.totalorder 1, %s22
      %p198 = scmp.lt.s32.totalorder %s22, 3
      %p199 = pnand %p197, %p198
      %p200 = pneg %p199
      // Predicated region
      $region9: #{tpu_custom_call.1} parent=5 // pred_check
        _
      $region10: #{tpu_custom_call.1} parent=5 // pred_check_branch
        %202 = sbr.rel (%p199) target = $region12
      $region11: #{tpu_custom_call.1} parent=5 // pred_region
        %s203 = ssub.s32 %s22, 1
        // Predicated region
        $region13: #{tpu_custom_call.1} parent=11 // pred_check
          %p204 = pneg %p121
        $region14: #{tpu_custom_call.1} parent=11 // pred_check_branch
          %206 = sbr.rel (%p204) target = $region16
        $region15: #{tpu_custom_call.1} parent=11 // pred_region
          %s208 = ssub.s32 8192, 8192
          %209 = vsyncadd [#allocation9], %s208
          %s210 = sshll.u32 [#allocation8], 4
          %s211 = int_to_ptr.vmem [resolvable:$true] %s210
          %216 = dma.hbm_to_vmem [thread:$0]  %s3, 8192, %s211, [#allocation9], 128, 128, 8
        $region16: #{tpu_custom_call.1} parent=11 // pred_fallthru
          _
        // Predicated region
        $region17: #{tpu_custom_call.1} parent=11 // pred_check
          %p217 = pneg %p142
        $region18: #{tpu_custom_call.1} parent=11 // pred_check_branch
          %219 = sbr.rel (%p217) target = $region20
        $region19: #{tpu_custom_call.1} parent=11 // pred_region
          %s221 = ssub.s32 128, 128
          %222 = vsyncadd [#allocation9], %s221
          %s224 = sshll.u32 [#allocation10], 4
          %s225 = int_to_ptr.vmem [resolvable:$true] %s224
          %227 = dma.hbm_to_vmem [thread:$0]  %s4, 128, %s225, [#allocation9]
        $region20: #{tpu_custom_call.1} parent=11 // pred_fallthru
          _
        // Predicated region
        $region21: #{tpu_custom_call.1} parent=11 // pred_check
          %p228 = pneg %p163
        $region22: #{tpu_custom_call.1} parent=11 // pred_check_branch
          %230 = sbr.rel (%p228) target = $region24
        $region23: #{tpu_custom_call.1} parent=11 // pred_region
          _
        $region24: #{tpu_custom_call.1} parent=11 // pred_fallthru
          _
      $region12: #{tpu_custom_call.1} parent=5 // pred_fallthru
        _
      %p231 = scmp.lt.s32.totalorder %s22, 2
      // Predicated region
      $region25: #{tpu_custom_call.1} parent=5 // pred_check
        %p232 = pneg %p231
      $region26: #{tpu_custom_call.1} parent=5 // pred_check_branch
        %234 = sbr.rel (%p232) target = $region28
      $region27: #{tpu_custom_call.1} parent=5 // pred_region
        // Predicated region
        $region29: #{tpu_custom_call.1} parent=27 // pred_check
          %p235 = pneg %p42
        $region30: #{tpu_custom_call.1} parent=27 // pred_check_branch
          %237 = sbr.rel (%p235) target = $region32
        $region31: #{tpu_custom_call.1} parent=27 // pred_region
          %s238 = sand.u32 %s32, 1
          %s239 = scalar_lea.sflag [#allocation3], %s238
          %s240 = sand.u32 %s32, 1
          %s241 = smul.addr %s240, 64
          %s242 = scalar_lea.vmem [#allocation2], %s241
          %s244 = ssub.s32 1024, 1024
          %245 = vsyncadd %s239, %s244
          %s246 = smul.addr %s22, 8
          %s247 = smul.addr %s246, 128
          %s248 = scalar_lea.hbm %s0, %s247
          %s249 = sshll.u32 %s242, 4
          %s250 = int_to_ptr.vmem [resolvable:$true] %s249
          %255 = dma.hbm_to_vmem [thread:$0]  %s248, 1024, %s250, %s239, 128, 128, 8
        $region32: #{tpu_custom_call.1} parent=27 // pred_fallthru
          _
        // Predicated region
        $region33: #{tpu_custom_call.1} parent=27 // pred_check
          %p256 = pneg %p68
        $region34: #{tpu_custom_call.1} parent=27 // pred_check_branch
          %258 = sbr.rel (%p256) target = $region36
        $region35: #{tpu_custom_call.1} parent=27 // pred_region
          %s259 = sand.u32 %s22, 1
          %s260 = scalar_lea.sflag [#allocation6], %s259
          %s261 = sand.u32 %s58, 1
          %s262 = smul.addr %s261, 32
          %s263 = scalar_lea.vmem [#allocation5], %s262
          %s265 = ssub.s32 512, 512
          %266 = vsyncadd %s260, %s265
          %s267 = smul.addr %s22, 8
          %s268 = smul.addr %s267, 64
          %s269 = scalar_lea.hbm %s1, %s268
          %s270 = sshll.u32 %s263, 4
          %s271 = int_to_ptr.vmem [resolvable:$true] %s270
          %276 = dma.hbm_to_vmem [thread:$0]  %s269, 512, %s271, %s260, 64, 64, 4
        $region36: #{tpu_custom_call.1} parent=27 // pred_fallthru
          _
        // Predicated region
        $region37: #{tpu_custom_call.1} parent=27 // pred_check
          %p277 = pneg %p94
        $region38: #{tpu_custom_call.1} parent=27 // pred_check_branch
          %279 = sbr.rel (%p277) target = $region40
        $region39: #{tpu_custom_call.1} parent=27 // pred_region
          %s280 = sand.u32 %s22, 1
          %s281 = scalar_lea.sflag [#allocation6], %s280
          %s282 = sand.u32 %s84, 1
          %s283 = smul.addr %s282, 64
          %s284 = scalar_lea.vmem [#allocation7], %s283
          %s286 = ssub.s32 1024, 1024
          %287 = vsyncadd %s281, %s286
          %s288 = smul.addr %s22, 8
          %s289 = smul.addr %s288, 128
          %s290 = scalar_lea.hbm %s2, %s289
          %s291 = sshll.u32 %s284, 4
          %s292 = int_to_ptr.vmem [resolvable:$true] %s291
          %297 = dma.hbm_to_vmem [thread:$0]  %s290, 1024, %s292, %s281, 128, 128, 8
        $region40: #{tpu_custom_call.1} parent=27 // pred_fallthru
          _
      $region28: #{tpu_custom_call.1} parent=5 // pred_fallthru
        _
      %p298 = scmp.le.s32.totalorder 1, %s22
      %p299 = scmp.lt.s32.totalorder %s22, 3
      %p300 = pnand %p298, %p299
      %p301 = pneg %p300
      // Predicated region
      $region41: #{tpu_custom_call.1} parent=5 // pred_check
        _
      $region42: #{tpu_custom_call.1} parent=5 // pred_check_branch
        %303 = sbr.rel (%p300) target = $region44
      $region43: #{tpu_custom_call.1} parent=5 // pred_region
        %s304 = ssub.s32 %s22, 1
        %s305 = sand.u32 %s35, 1
        %s306 = scalar_lea.sflag [#allocation3], %s305
        %s307 = sand.u32 %s35, 1
        %s308 = smul.addr %s307, 64
        %s309 = scalar_lea.vmem [#allocation2], %s308
        // Predicated region
        $region45: #{tpu_custom_call.1} parent=43 // pred_check
          %p310 = pneg %p48
        $region46: #{tpu_custom_call.1} parent=43 // pred_check_branch
          %312 = sbr.rel (%p310) target = $region48
        $region47: #{tpu_custom_call.1} parent=43 // pred_region
          %313 = dma.done %s306, 1024
        $region48: #{tpu_custom_call.1} parent=43 // pred_fallthru
          _
        %s314 = sand.u32 %s27, 1
        %s315 = scalar_lea.sflag [#allocation6], %s314
        %s316 = sand.u32 %s61, 1
        %s317 = smul.addr %s316, 32
        %s318 = scalar_lea.vmem [#allocation5], %s317
        // Predicated region
        $region49: #{tpu_custom_call.1} parent=43 // pred_check
          %p319 = pneg %p74
        $region50: #{tpu_custom_call.1} parent=43 // pred_check_branch
          %321 = sbr.rel (%p319) target = $region52
        $region51: #{tpu_custom_call.1} parent=43 // pred_region
          %322 = dma.done %s315, 512
        $region52: #{tpu_custom_call.1} parent=43 // pred_fallthru
          _
        %s323 = sand.u32 %s27, 1
        %s324 = scalar_lea.sflag [#allocation6], %s323
        %s325 = sand.u32 %s87, 1
        %s326 = smul.addr %s325, 64
        %s327 = scalar_lea.vmem [#allocation7], %s326
        // Predicated region
        $region53: #{tpu_custom_call.1} parent=43 // pred_check
          %p328 = pneg %p100
        $region54: #{tpu_custom_call.1} parent=43 // pred_check_branch
          %330 = sbr.rel (%p328) target = $region56
        $region55: #{tpu_custom_call.1} parent=43 // pred_region
          %331 = dma.done %s324, 1024
        $region56: #{tpu_custom_call.1} parent=43 // pred_fallthru
          _
        // Predicated region
        $region57: #{tpu_custom_call.1} parent=43 // pred_check
          %p332 = pneg %p121
        $region58: #{tpu_custom_call.1} parent=43 // pred_check_branch
          %334 = sbr.rel (%p332) target = $region60
        $region59: #{tpu_custom_call.1} parent=43 // pred_region
          %335 = dma.done [#allocation9], 8192
        $region60: #{tpu_custom_call.1} parent=43 // pred_fallthru
          _
        // Predicated region
        $region61: #{tpu_custom_call.1} parent=43 // pred_check
          %p336 = pneg %p142
        $region62: #{tpu_custom_call.1} parent=43 // pred_check_branch
          %338 = sbr.rel (%p336) target = $region64
        $region63: #{tpu_custom_call.1} parent=43 // pred_region
          %339 = dma.done [#allocation9], 128
        $region64: #{tpu_custom_call.1} parent=43 // pred_fallthru
          _
        %s340 = sand.u32 %s35, 1
        %s341 = scalar_lea.sflag [#allocation3], %s340
        %s342 = sand.u32 %s35, 1
        %s343 = smul.addr %s342, 64
        %s344 = scalar_lea.vmem [#allocation2], %s343
        %p345 = pneg %p48
        %p346 = pneg %p45
        %s347 = sand.u32 %s27, 1
        %s348 = scalar_lea.sflag [#allocation6], %s347
        %s349 = sand.u32 %s61, 1
        %s350 = smul.addr %s349, 32
        %s351 = scalar_lea.vmem [#allocation5], %s350
        %p352 = pneg %p74
        %p353 = pneg %p71
        %s354 = sand.u32 %s27, 1
        %s355 = scalar_lea.sflag [#allocation6], %s354
        %s356 = sand.u32 %s87, 1
        %s357 = smul.addr %s356, 64
        %s358 = scalar_lea.vmem [#allocation7], %s357
        %p359 = pneg %p100
        %p360 = pneg %p97
        %p361 = pneg %p121
        %p362 = pneg %p118
        %p363 = pneg %p142
        %p364 = pneg %p139
        %p365 = pneg %p163
        %p366 = pneg %p160
        %p367 = pneg %p189
        %p368 = pneg %p186
        %s369 = sand.u32 %s176, 1
        %s370 = scalar_lea.sflag [#allocation4], %s369
        %s371 = sand.u32 %s176, 1
        %s372 = smul.addr %s371, 64
        %s373 = scalar_lea.vmem [#allocation11], %s372
        %v374 = vld [vmem:[%s309] sm:$0xff]
        %v375 = vld [vmem:[%s309 + $0x8] sm:$0xff]
        %v376 = vld [vmem:[%s309 + $0x10] sm:$0xff]
        %v377 = vld [vmem:[%s309 + $0x18] sm:$0xff]
        %v378 = vld [vmem:[%s309 + $0x20] sm:$0xff]
        %v379 = vld [vmem:[%s309 + $0x28] sm:$0xff]
        %v380 = vld [vmem:[%s309 + $0x30] sm:$0xff]
        %v381 = vld [vmem:[%s309 + $0x38] sm:$0xff]
        %v382 = vld [vmem:[%s327] sm:$0xff]
        %v383 = vld [vmem:[%s327 + $0x8] sm:$0xff]
        %v384 = vld [vmem:[%s327 + $0x10] sm:$0xff]
        %v385 = vld [vmem:[%s327 + $0x18] sm:$0xff]
        %v386 = vld [vmem:[%s327 + $0x20] sm:$0xff]
        %v387 = vld [vmem:[%s327 + $0x28] sm:$0xff]
        %v388 = vld [vmem:[%s327 + $0x30] sm:$0xff]
        %v389 = vld [vmem:[%s327 + $0x38] sm:$0xff]
        %v390 = vld [vmem:[%s318] sm:$0xf]
        %v391 = vld [vmem:[%s318 + $0x4] sm:$0xf]
        %v392 = vld [vmem:[%s318 + $0x8] sm:$0xf]
        %v393 = vld [vmem:[%s318 + $0xc] sm:$0xf]
        %v394 = vld [vmem:[%s318 + $0x10] sm:$0xf]
        %v395 = vld [vmem:[%s318 + $0x14] sm:$0xf]
        %v396 = vld [vmem:[%s318 + $0x18] sm:$0xf]
        %v397 = vld [vmem:[%s318 + $0x1c] sm:$0xf]
        %406 = vrot.lane.b32.xlu0 %v390, 32
        %v407 = vpop.permute.xlu0 %406
        %408 = vrot.lane.b32.xlu0 %v391, 32
        %v409 = vpop.permute.xlu0 %408
        %410 = vrot.lane.b32.xlu0 %v392, 32
        %v411 = vpop.permute.xlu0 %410
        %412 = vrot.lane.b32.xlu0 %v393, 32
        %v413 = vpop.permute.xlu0 %412
        %414 = vrot.lane.b32.xlu0 %v394, 32
        %v415 = vpop.permute.xlu0 %414
        %416 = vrot.lane.b32.xlu0 %v395, 32
        %v417 = vpop.permute.xlu0 %416
        %418 = vrot.lane.b32.xlu0 %v396, 32
        %v419 = vpop.permute.xlu0 %418
        %420 = vrot.lane.b32.xlu0 %v397, 32
        %v421 = vpop.permute.xlu0 %420
        %430 = vrot.lane.b32.xlu0 %v390, 64
        %v431 = vpop.permute.xlu0 %430
        %432 = vrot.lane.b32.xlu0 %v391, 64
        %v433 = vpop.permute.xlu0 %432
        %434 = vrot.lane.b32.xlu0 %v392, 64
        %v435 = vpop.permute.xlu0 %434
        %436 = vrot.lane.b32.xlu0 %v393, 64
        %v437 = vpop.permute.xlu0 %436
        %438 = vrot.lane.b32.xlu0 %v394, 64
        %v439 = vpop.permute.xlu0 %438
        %440 = vrot.lane.b32.xlu0 %v395, 64
        %v441 = vpop.permute.xlu0 %440
        %442 = vrot.lane.b32.xlu0 %v396, 64
        %v443 = vpop.permute.xlu0 %442
        %444 = vrot.lane.b32.xlu0 %v397, 64
        %v445 = vpop.permute.xlu0 %444
        %vm454 = vcmask 261120
        %v455 = vsel %vm454, %v390, %v407
        %v456 = vsel %vm454, %v391, %v409
        %v457 = vsel %vm454, %v392, %v411
        %v458 = vsel %vm454, %v393, %v413
        %v459 = vsel %vm454, %v394, %v415
        %v460 = vsel %vm454, %v395, %v417
        %v461 = vsel %vm454, %v396, %v419
        %v462 = vsel %vm454, %v397, %v421
        %vm463 = vcmask 523264
        %v464 = vsel %vm463, %v455, %v407
        %v465 = vsel %vm463, %v456, %v409
        %v466 = vsel %vm463, %v457, %v411
        %v467 = vsel %vm463, %v458, %v413
        %v468 = vsel %vm463, %v459, %v415
        %v469 = vsel %vm463, %v460, %v417
        %v470 = vsel %vm463, %v461, %v419
        %v471 = vsel %vm463, %v462, %v421
        %vm472 = vcmask 785408
        %v473 = vsel %vm472, %v464, %v431
        %v474 = vsel %vm472, %v465, %v433
        %v475 = vsel %vm472, %v466, %v435
        %v476 = vsel %vm472, %v467, %v437
        %v477 = vsel %vm472, %v468, %v439
        %v478 = vsel %vm472, %v469, %v441
        %v479 = vsel %vm472, %v470, %v443
        %v480 = vsel %vm472, %v471, %v445
        %v489 = vrot.slane %v473, 4
        %v490 = vrot.slane %v474, 4
        %v491 = vrot.slane %v475, 4
        %v492 = vrot.slane %v476, 4
        %v493 = vrot.slane %v477, 4
        %v494 = vrot.slane %v478, 4
        %v495 = vrot.slane %v479, 4
        %v496 = vrot.slane %v480, 4
        %vm505 = vcmask 1043456
        %v506 = vsel %vm505, %v473, %v489
        %v507 = vsel %vm505, %v474, %v490
        %v508 = vsel %vm505, %v475, %v491
        %v509 = vsel %vm505, %v476, %v492
        %v510 = vsel %vm505, %v477, %v493
        %v511 = vsel %vm505, %v478, %v494
        %v512 = vsel %vm505, %v479, %v495
        %v513 = vsel %vm505, %v480, %v496
        %v514 = vld [vmem:[#allocation10] sm:$0xff]
        %v515 = vld [vmem:[%s5] sm:$0x1]
        %v516 = vmul.f32 %v506, %v514
        %v517 = vmul.f32 %v507, %v514
        %v518 = vmul.f32 %v508, %v514
        %v519 = vmul.f32 %v509, %v514
        %v520 = vmul.f32 %v510, %v514
        %v521 = vmul.f32 %v511, %v514
        %v522 = vmul.f32 %v512, %v514
        %v523 = vmul.f32 %v513, %v514
        %v524 = vlaneseq
        %v525 = vshrl.u32 %v524, 7
        %v526 = vsub.s32 0, %v525
        %v527 = vrot.slane %v515, %v526
        %v528 = vadd.f32 %v516, %v527
        %v529 = vadd.f32 %v517, %v527
        %v530 = vadd.f32 %v518, %v527
        %v531 = vadd.f32 %v519, %v527
        %v532 = vadd.f32 %v520, %v527
        %v533 = vadd.f32 %v521, %v527
        %v534 = vadd.f32 %v522, %v527
        %v535 = vadd.f32 %v523, %v527
        %v536 = vld [vmem:[%s5 + $0x1] sm:$0x1]
        %v537 = vld [vmem:[%s5 + $0x2] sm:$0x1]
        %v538 = vld [vmem:[#allocation8] sm:$0xff]
        %v539 = vld [vmem:[#allocation8 + $0x8] sm:$0xff]
        %v540 = vld [vmem:[#allocation8 + $0x10] sm:$0xff]
        %v541 = vld [vmem:[#allocation8 + $0x18] sm:$0xff]
        %v542 = vld [vmem:[#allocation8 + $0x20] sm:$0xff]
        %v543 = vld [vmem:[#allocation8 + $0x28] sm:$0xff]
        %v544 = vld [vmem:[#allocation8 + $0x30] sm:$0xff]
        %v545 = vld [vmem:[#allocation8 + $0x38] sm:$0xff]
        %v546 = vld [vmem:[#allocation8 + $0x40] sm:$0xff]
        %v547 = vld [vmem:[#allocation8 + $0x48] sm:$0xff]
        %v548 = vld [vmem:[#allocation8 + $0x50] sm:$0xff]
        %v549 = vld [vmem:[#allocation8 + $0x58] sm:$0xff]
        %v550 = vld [vmem:[#allocation8 + $0x60] sm:$0xff]
        %v551 = vld [vmem:[#allocation8 + $0x68] sm:$0xff]
        %v552 = vld [vmem:[#allocation8 + $0x70] sm:$0xff]
        %v553 = vld [vmem:[#allocation8 + $0x78] sm:$0xff]
        %s554 = scalar_lea.vmem [#allocation8], 128
        %v555 = vld [vmem:[%s554] sm:$0xff]
        %v556 = vld [vmem:[%s554 + $0x8] sm:$0xff]
        %v557 = vld [vmem:[%s554 + $0x10] sm:$0xff]
        %v558 = vld [vmem:[%s554 + $0x18] sm:$0xff]
        %v559 = vld [vmem:[%s554 + $0x20] sm:$0xff]
        %v560 = vld [vmem:[%s554 + $0x28] sm:$0xff]
        %v561 = vld [vmem:[%s554 + $0x30] sm:$0xff]
        %v562 = vld [vmem:[%s554 + $0x38] sm:$0xff]
        %v563 = vld [vmem:[%s554 + $0x40] sm:$0xff]
        %v564 = vld [vmem:[%s554 + $0x48] sm:$0xff]
        %v565 = vld [vmem:[%s554 + $0x50] sm:$0xff]
        %v566 = vld [vmem:[%s554 + $0x58] sm:$0xff]
        %v567 = vld [vmem:[%s554 + $0x60] sm:$0xff]
        %v568 = vld [vmem:[%s554 + $0x68] sm:$0xff]
        %v569 = vld [vmem:[%s554 + $0x70] sm:$0xff]
        %v570 = vld [vmem:[%s554 + $0x78] sm:$0xff]
        %571 = vmatprep.subr.mxu0 0.0
        %572 = vmatpush1.msra.mxu0 %v570
        %573 = vmatprep.subr.mxu0 0.0
        %574 = vmatpush1.msra.mxu0 %v569
        %575 = vmatprep.subr.mxu0 0.0
        %576 = vmatpush1.msra.mxu0 %v568
        %577 = vmatprep.subr.mxu0 0.0
        %578 = vmatpush1.msra.mxu0 %v567
        %579 = vmatprep.subr.mxu0 0.0
        %580 = vmatpush1.msra.mxu0 %v566
        %581 = vmatprep.subr.mxu0 0.0
        %582 = vmatpush1.msra.mxu0 %v565
        %583 = vmatprep.subr.mxu0 0.0
        %584 = vmatpush1.msra.mxu0 %v564
        %585 = vmatprep.subr.mxu0 0.0
        %586 = vmatpush1.msra.mxu0 %v563
        %587 = vmatprep.subr.mxu0 0.0
        %588 = vmatpush1.msra.mxu0 %v562
        %589 = vmatprep.subr.mxu0 0.0
        %590 = vmatpush1.msra.mxu0 %v561
        %591 = vmatprep.subr.mxu0 0.0
        %592 = vmatpush1.msra.mxu0 %v560
        %593 = vmatprep.subr.mxu0 0.0
        %594 = vmatpush1.msra.mxu0 %v559
        %595 = vmatprep.subr.mxu0 0.0
        %596 = vmatpush1.msra.mxu0 %v558
        %597 = vmatprep.subr.mxu0 0.0
        %598 = vmatpush1.msra.mxu0 %v557
        %599 = vmatprep.subr.mxu0 0.0
        %600 = vmatpush1.msra.mxu0 %v556
        %601 = vmatprep.subr.mxu0 0.0
        %602 = vmatpush1.msra.mxu0 %v555
        %603 = vmatprep.subr.mxu0 0.0
        %604 = vmatpush2.msra.mxu0 0.0
        %605 = vmatprep.subr.mxu0 0.0
        %606 = vmatpush2.msra.mxu0 0.0
        %607 = vmatprep.subr.mxu0 0.0
        %608 = vmatpush2.msra.mxu0 0.0
        %609 = vmatprep.subr.mxu0 0.0
        %610 = vmatpush2.msra.mxu0 0.0
        %611 = vmatprep.subr.mxu0 0.0
        %612 = vmatpush2.msra.mxu0 0.0
        %613 = vmatprep.subr.mxu0 0.0
        %614 = vmatpush2.msra.mxu0 0.0
        %615 = vmatprep.subr.mxu0 0.0
        %616 = vmatpush2.msra.mxu0 0.0
        %617 = vmatprep.subr.mxu0 0.0
        %618 = vmatpush2.msra.mxu0 0.0
        %619 = vmatprep.subr.mxu0 0.0
        %620 = vmatpush2.msra.mxu0 0.0
        %621 = vmatprep.subr.mxu0 0.0
        %622 = vmatpush2.msra.mxu0 0.0
        %623 = vmatprep.subr.mxu0 0.0
        %624 = vmatpush2.msra.mxu0 0.0
        %625 = vmatprep.subr.mxu0 0.0
        %626 = vmatpush2.msra.mxu0 0.0
        %627 = vmatprep.subr.mxu0 0.0
        %628 = vmatpush2.msra.mxu0 0.0
        %629 = vmatprep.subr.mxu0 0.0
        %630 = vmatpush2.msra.mxu0 0.0
        %631 = vmatprep.subr.mxu0 0.0
        %632 = vmatpush2.msra.mxu0 0.0
        %633 = vmatprep.subr.mxu0 0.0
        %634 = vmatpush2.msra.mxu0 0.0
        %635 = vmatprep.mubr.f32.mxu0 0.0
        %636 = vmatmul.mubr.f32.gmra.mxu0 %v374
        %v637 = vpop.f32.mrf.mxu0
        %v638 = vadd.f32 0.0, %v637
        %v639 = vpop.f32.mrf.mxu0
        %640 = vmatprep.mubr.f32.mxu0 0.0
        %641 = vmatmul.mubr.f32.gmra.mxu0 %v375
        %v642 = vpop.f32.mrf.mxu0
        %v643 = vadd.f32 0.0, %v642
        %v644 = vpop.f32.mrf.mxu0
        %645 = vmatprep.mubr.f32.mxu0 0.0
        %646 = vmatmul.mubr.f32.gmra.mxu0 %v376
        %v647 = vpop.f32.mrf.mxu0
        %v648 = vadd.f32 0.0, %v647
        %v649 = vpop.f32.mrf.mxu0
        %650 = vmatprep.mubr.f32.mxu0 0.0
        %651 = vmatmul.mubr.f32.gmra.mxu0 %v377
        %v652 = vpop.f32.mrf.mxu0
        %v653 = vadd.f32 0.0, %v652
        %v654 = vpop.f32.mrf.mxu0
        %655 = vmatprep.mubr.f32.mxu0 0.0
        %656 = vmatmul.mubr.f32.gmra.mxu0 %v378
        %v657 = vpop.f32.mrf.mxu0
        %v658 = vadd.f32 0.0, %v657
        %v659 = vpop.f32.mrf.mxu0
        %660 = vmatprep.mubr.f32.mxu0 0.0
        %661 = vmatmul.mubr.f32.gmra.mxu0 %v379
        %v662 = vpop.f32.mrf.mxu0
        %v663 = vadd.f32 0.0, %v662
        %v664 = vpop.f32.mrf.mxu0
        %665 = vmatprep.mubr.f32.mxu0 0.0
        %666 = vmatmul.mubr.f32.gmra.mxu0 %v380
        %v667 = vpop.f32.mrf.mxu0
        %v668 = vadd.f32 0.0, %v667
        %v669 = vpop.f32.mrf.mxu0
        %670 = vmatprep.mubr.f32.mxu0 0.0
        %671 = vmatmul.mubr.f32.gmra.mxu0 %v381
        %v672 = vpop.f32.mrf.mxu0
        %v673 = vadd.f32 0.0, %v672
        %v674 = vpop.f32.mrf.mxu0
        %675 = vdwg.mxu0
        %676 = vmatprep.subr.mxu0 0.0
        %677 = vmatpush1.msra.mxu0 %v553
        %678 = vmatprep.subr.mxu0 0.0
        %679 = vmatpush1.msra.mxu0 %v552
        %680 = vmatprep.subr.mxu0 0.0
        %681 = vmatpush1.msra.mxu0 %v551
        %682 = vmatprep.subr.mxu0 0.0
        %683 = vmatpush1.msra.mxu0 %v550
        %684 = vmatprep.subr.mxu0 0.0
        %685 = vmatpush1.msra.mxu0 %v549
        %686 = vmatprep.subr.mxu0 0.0
        %687 = vmatpush1.msra.mxu0 %v548
        %688 = vmatprep.subr.mxu0 0.0
        %689 = vmatpush1.msra.mxu0 %v547
        %690 = vmatprep.subr.mxu0 0.0
        %691 = vmatpush1.msra.mxu0 %v546
        %692 = vmatprep.subr.mxu0 0.0
        %693 = vmatpush1.msra.mxu0 %v545
        %694 = vmatprep.subr.mxu0 0.0
        %695 = vmatpush1.msra.mxu0 %v544
        %696 = vmatprep.subr.mxu0 0.0
        %697 = vmatpush1.msra.mxu0 %v543
        %698 = vmatprep.subr.mxu0 0.0
        %699 = vmatpush1.msra.mxu0 %v542
        %700 = vmatprep.subr.mxu0 0.0
        %701 = vmatpush1.msra.mxu0 %v541
        %702 = vmatprep.subr.mxu0 0.0
        %703 = vmatpush1.msra.mxu0 %v540
        %704 = vmatprep.subr.mxu0 0.0
        %705 = vmatpush1.msra.mxu0 %v539
        %706 = vmatprep.subr.mxu0 0.0
        %707 = vmatpush1.msra.mxu0 %v538
        %708 = vmatprep.subr.mxu0 0.0
        %709 = vmatpush2.msra.mxu0 0.0
        %710 = vmatprep.subr.mxu0 0.0
        %711 = vmatpush2.msra.mxu0 0.0
        %712 = vmatprep.subr.mxu0 0.0
        %713 = vmatpush2.msra.mxu0 0.0
        %714 = vmatprep.subr.mxu0 0.0
        %715 = vmatpush2.msra.mxu0 0.0
        %716 = vmatprep.subr.mxu0 0.0
        %717 = vmatpush2.msra.mxu0 0.0
        %718 = vmatprep.subr.mxu0 0.0
        %719 = vmatpush2.msra.mxu0 0.0
        %720 = vmatprep.subr.mxu0 0.0
        %721 = vmatpush2.msra.mxu0 0.0
        %722 = vmatprep.subr.mxu0 0.0
        %723 = vmatpush2.msra.mxu0 0.0
        %724 = vmatprep.subr.mxu0 0.0
        %725 = vmatpush2.msra.mxu0 0.0
        %726 = vmatprep.subr.mxu0 0.0
        %727 = vmatpush2.msra.mxu0 0.0
        %728 = vmatprep.subr.mxu0 0.0
        %729 = vmatpush2.msra.mxu0 0.0
        %730 = vmatprep.subr.mxu0 0.0
        %731 = vmatpush2.msra.mxu0 0.0
        %732 = vmatprep.subr.mxu0 0.0
        %733 = vmatpush2.msra.mxu0 0.0
        %734 = vmatprep.subr.mxu0 0.0
        %735 = vmatpush2.msra.mxu0 0.0
        %736 = vmatprep.subr.mxu0 0.0
        %737 = vmatpush2.msra.mxu0 0.0
        %738 = vmatprep.subr.mxu0 0.0
        %739 = vmatpush2.msra.mxu0 0.0
        %740 = vmatprep.mubr.f32.mxu0 0.0
        %741 = vmatmul.mubr.f32.gmra.mxu0 %v528
        %v742 = vpop.f32.mrf.mxu0
        %v743 = vadd.f32 %v638, %v742
        %v744 = vpop.f32.mrf.mxu0
        %745 = vmatprep.mubr.f32.mxu0 0.0
        %746 = vmatmul.mubr.f32.gmra.mxu0 %v529
        %v747 = vpop.f32.mrf.mxu0
        %v748 = vadd.f32 %v643, %v747
        %v749 = vpop.f32.mrf.mxu0
        %750 = vmatprep.mubr.f32.mxu0 0.0
        %751 = vmatmul.mubr.f32.gmra.mxu0 %v530
        %v752 = vpop.f32.mrf.mxu0
        %v753 = vadd.f32 %v648, %v752
        %v754 = vpop.f32.mrf.mxu0
        %755 = vmatprep.mubr.f32.mxu0 0.0
        %756 = vmatmul.mubr.f32.gmra.mxu0 %v531
        %v757 = vpop.f32.mrf.mxu0
        %v758 = vadd.f32 %v653, %v757
        %v759 = vpop.f32.mrf.mxu0
        %760 = vmatprep.mubr.f32.mxu0 0.0
        %761 = vmatmul.mubr.f32.gmra.mxu0 %v532
        %v762 = vpop.f32.mrf.mxu0
        %v763 = vadd.f32 %v658, %v762
        %v764 = vpop.f32.mrf.mxu0
        %765 = vmatprep.mubr.f32.mxu0 0.0
        %766 = vmatmul.mubr.f32.gmra.mxu0 %v533
        %v767 = vpop.f32.mrf.mxu0
        %v768 = vadd.f32 %v663, %v767
        %v769 = vpop.f32.mrf.mxu0
        %770 = vmatprep.mubr.f32.mxu0 0.0
        %771 = vmatmul.mubr.f32.gmra.mxu0 %v534
        %v772 = vpop.f32.mrf.mxu0
        %v773 = vadd.f32 %v668, %v772
        %v774 = vpop.f32.mrf.mxu0
        %775 = vmatprep.mubr.f32.mxu0 0.0
        %776 = vmatmul.mubr.f32.gmra.mxu0 %v535
        %v777 = vpop.f32.mrf.mxu0
        %v778 = vadd.f32 %v673, %v777
        %v779 = vpop.f32.mrf.mxu0
        %780 = vdwg.mxu0
        %v781 = vlaneseq
        %v782 = vshrl.u32 %v781, 7
        %v783 = vsub.s32 0, %v782
        %v784 = vrot.slane %v536, %v783
        %v785 = vadd.f32 %v743, %v784
        %v786 = vadd.f32 %v748, %v784
        %v787 = vadd.f32 %v753, %v784
        %v788 = vadd.f32 %v758, %v784
        %v789 = vadd.f32 %v763, %v784
        %v790 = vadd.f32 %v768, %v784
        %v791 = vadd.f32 %v773, %v784
        %v792 = vadd.f32 %v778, %v784
        %v793 = vxor.u32 %v785, 2147483648
        %v794 = vxor.u32 %v786, 2147483648
        %v795 = vxor.u32 %v787, 2147483648
        %v796 = vxor.u32 %v788, 2147483648
        %v797 = vxor.u32 %v789, 2147483648
        %v798 = vxor.u32 %v790, 2147483648
        %v799 = vxor.u32 %v791, 2147483648
        %v800 = vxor.u32 %v792, 2147483648
        %v801 = vmul.f32 %v793, 1.442695
        %v802 = vpow.pop %v801
        %v803 = vmul.f32 %v794, 1.442695
        %v804 = vpow.pop %v803
        %v805 = vmul.f32 %v795, 1.442695
        %v806 = vpow.pop %v805
        %v807 = vmul.f32 %v796, 1.442695
        %v808 = vpow.pop %v807
        %v809 = vmul.f32 %v797, 1.442695
        %v810 = vpow.pop %v809
        %v811 = vmul.f32 %v798, 1.442695
        %v812 = vpow.pop %v811
        %v813 = vmul.f32 %v799, 1.442695
        %v814 = vpow.pop %v813
        %v815 = vmul.f32 %v800, 1.442695
        %v816 = vpow.pop %v815
        %v817 = vadd.f32 %v802, 1.0
        %v818 = vadd.f32 %v804, 1.0
        %v819 = vadd.f32 %v806, 1.0
        %v820 = vadd.f32 %v808, 1.0
        %v821 = vadd.f32 %v810, 1.0
        %v822 = vadd.f32 %v812, 1.0
        %v823 = vadd.f32 %v814, 1.0
        %v824 = vadd.f32 %v816, 1.0
        %v825 = vrcp.pop %v817
        %v826 = vmul.f32 1.0, %v825
        %v827 = vrcp.pop %v818
        %v828 = vmul.f32 1.0, %v827
        %v829 = vrcp.pop %v819
        %v830 = vmul.f32 1.0, %v829
        %v831 = vrcp.pop %v820
        %v832 = vmul.f32 1.0, %v831
        %v833 = vrcp.pop %v821
        %v834 = vmul.f32 1.0, %v833
        %v835 = vrcp.pop %v822
        %v836 = vmul.f32 1.0, %v835
        %v837 = vrcp.pop %v823
        %v838 = vmul.f32 1.0, %v837
        %v839 = vrcp.pop %v824
        %v840 = vmul.f32 1.0, %v839
        %s841 = scalar_lea.vmem [#allocation8], 256
        %v842 = vld [vmem:[%s841] sm:$0xff]
        %v843 = vld [vmem:[%s841 + $0x8] sm:$0xff]
        %v844 = vld [vmem:[%s841 + $0x10] sm:$0xff]
        %v845 = vld [vmem:[%s841 + $0x18] sm:$0xff]
        %v846 = vld [vmem:[%s841 + $0x20] sm:$0xff]
        %v847 = vld [vmem:[%s841 + $0x28] sm:$0xff]
        %v848 = vld [vmem:[%s841 + $0x30] sm:$0xff]
        %v849 = vld [vmem:[%s841 + $0x38] sm:$0xff]
        %v850 = vld [vmem:[%s841 + $0x40] sm:$0xff]
        %v851 = vld [vmem:[%s841 + $0x48] sm:$0xff]
        %v852 = vld [vmem:[%s841 + $0x50] sm:$0xff]
        %v853 = vld [vmem:[%s841 + $0x58] sm:$0xff]
        %v854 = vld [vmem:[%s841 + $0x60] sm:$0xff]
        %v855 = vld [vmem:[%s841 + $0x68] sm:$0xff]
        %v856 = vld [vmem:[%s841 + $0x70] sm:$0xff]
        %v857 = vld [vmem:[%s841 + $0x78] sm:$0xff]
        %s858 = scalar_lea.vmem [#allocation8], 384
        %v859 = vld [vmem:[%s858] sm:$0xff]
        %v860 = vld [vmem:[%s858 + $0x8] sm:$0xff]
        %v861 = vld [vmem:[%s858 + $0x10] sm:$0xff]
        %v862 = vld [vmem:[%s858 + $0x18] sm:$0xff]
        %v863 = vld [vmem:[%s858 + $0x20] sm:$0xff]
        %v864 = vld [vmem:[%s858 + $0x28] sm:$0xff]
        %v865 = vld [vmem:[%s858 + $0x30] sm:$0xff]
        %v866 = vld [vmem:[%s858 + $0x38] sm:$0xff]
        %v867 = vld [vmem:[%s858 + $0x40] sm:$0xff]
        %v868 = vld [vmem:[%s858 + $0x48] sm:$0xff]
        %v869 = vld [vmem:[%s858 + $0x50] sm:$0xff]
        %v870 = vld [vmem:[%s858 + $0x58] sm:$0xff]
        %v871 = vld [vmem:[%s858 + $0x60] sm:$0xff]
        %v872 = vld [vmem:[%s858 + $0x68] sm:$0xff]
        %v873 = vld [vmem:[%s858 + $0x70] sm:$0xff]
        %v874 = vld [vmem:[%s858 + $0x78] sm:$0xff]
        %875 = vmatprep.subr.mxu0 0.0
        %876 = vmatpush1.msra.mxu0 %v874
        %877 = vmatprep.subr.mxu0 0.0
        %878 = vmatpush1.msra.mxu0 %v873
        %879 = vmatprep.subr.mxu0 0.0
        %880 = vmatpush1.msra.mxu0 %v872
        %881 = vmatprep.subr.mxu0 0.0
        %882 = vmatpush1.msra.mxu0 %v871
        %883 = vmatprep.subr.mxu0 0.0
        %884 = vmatpush1.msra.mxu0 %v870
        %885 = vmatprep.subr.mxu0 0.0
        %886 = vmatpush1.msra.mxu0 %v869
        %887 = vmatprep.subr.mxu0 0.0
        %888 = vmatpush1.msra.mxu0 %v868
        %889 = vmatprep.subr.mxu0 0.0
        %890 = vmatpush1.msra.mxu0 %v867
        %891 = vmatprep.subr.mxu0 0.0
        %892 = vmatpush1.msra.mxu0 %v866
        %893 = vmatprep.subr.mxu0 0.0
        %894 = vmatpush1.msra.mxu0 %v865
        %895 = vmatprep.subr.mxu0 0.0
        %896 = vmatpush1.msra.mxu0 %v864
        %897 = vmatprep.subr.mxu0 0.0
        %898 = vmatpush1.msra.mxu0 %v863
        %899 = vmatprep.subr.mxu0 0.0
        %900 = vmatpush1.msra.mxu0 %v862
        %901 = vmatprep.subr.mxu0 0.0
        %902 = vmatpush1.msra.mxu0 %v861
        %903 = vmatprep.subr.mxu0 0.0
        %904 = vmatpush1.msra.mxu0 %v860
        %905 = vmatprep.subr.mxu0 0.0
        %906 = vmatpush1.msra.mxu0 %v859
        %907 = vmatprep.subr.mxu0 0.0
        %908 = vmatpush2.msra.mxu0 0.0
        %909 = vmatprep.subr.mxu0 0.0
        %910 = vmatpush2.msra.mxu0 0.0
        %911 = vmatprep.subr.mxu0 0.0
        %912 = vmatpush2.msra.mxu0 0.0
        %913 = vmatprep.subr.mxu0 0.0
        %914 = vmatpush2.msra.mxu0 0.0
        %915 = vmatprep.subr.mxu0 0.0
        %916 = vmatpush2.msra.mxu0 0.0
        %917 = vmatprep.subr.mxu0 0.0
        %918 = vmatpush2.msra.mxu0 0.0
        %919 = vmatprep.subr.mxu0 0.0
        %920 = vmatpush2.msra.mxu0 0.0
        %921 = vmatprep.subr.mxu0 0.0
        %922 = vmatpush2.msra.mxu0 0.0
        %923 = vmatprep.subr.mxu0 0.0
        %924 = vmatpush2.msra.mxu0 0.0
        %925 = vmatprep.subr.mxu0 0.0
        %926 = vmatpush2.msra.mxu0 0.0
        %927 = vmatprep.subr.mxu0 0.0
        %928 = vmatpush2.msra.mxu0 0.0
        %929 = vmatprep.subr.mxu0 0.0
        %930 = vmatpush2.msra.mxu0 0.0
        %931 = vmatprep.subr.mxu0 0.0
        %932 = vmatpush2.msra.mxu0 0.0
        %933 = vmatprep.subr.mxu0 0.0
        %934 = vmatpush2.msra.mxu0 0.0
        %935 = vmatprep.subr.mxu0 0.0
        %936 = vmatpush2.msra.mxu0 0.0
        %937 = vmatprep.subr.mxu0 0.0
        %938 = vmatpush2.msra.mxu0 0.0
        %939 = vmatprep.mubr.f32.mxu0 0.0
        %940 = vmatmul.mubr.f32.gmra.mxu0 %v374
        %v941 = vpop.f32.mrf.mxu0
        %v942 = vadd.f32 0.0, %v941
        %v943 = vpop.f32.mrf.mxu0
        %944 = vmatprep.mubr.f32.mxu0 0.0
        %945 = vmatmul.mubr.f32.gmra.mxu0 %v375
        %v946 = vpop.f32.mrf.mxu0
        %v947 = vadd.f32 0.0, %v946
        %v948 = vpop.f32.mrf.mxu0
        %949 = vmatprep.mubr.f32.mxu0 0.0
        %950 = vmatmul.mubr.f32.gmra.mxu0 %v376
        %v951 = vpop.f32.mrf.mxu0
        %v952 = vadd.f32 0.0, %v951
        %v953 = vpop.f32.mrf.mxu0
        %954 = vmatprep.mubr.f32.mxu0 0.0
        %955 = vmatmul.mubr.f32.gmra.mxu0 %v377
        %v956 = vpop.f32.mrf.mxu0
        %v957 = vadd.f32 0.0, %v956
        %v958 = vpop.f32.mrf.mxu0
        %959 = vmatprep.mubr.f32.mxu0 0.0
        %960 = vmatmul.mubr.f32.gmra.mxu0 %v378
        %v961 = vpop.f32.mrf.mxu0
        %v962 = vadd.f32 0.0, %v961
        %v963 = vpop.f32.mrf.mxu0
        %964 = vmatprep.mubr.f32.mxu0 0.0
        %965 = vmatmul.mubr.f32.gmra.mxu0 %v379
        %v966 = vpop.f32.mrf.mxu0
        %v967 = vadd.f32 0.0, %v966
        %v968 = vpop.f32.mrf.mxu0
        %969 = vmatprep.mubr.f32.mxu0 0.0
        %970 = vmatmul.mubr.f32.gmra.mxu0 %v380
        %v971 = vpop.f32.mrf.mxu0
        %v972 = vadd.f32 0.0, %v971
        %v973 = vpop.f32.mrf.mxu0
        %974 = vmatprep.mubr.f32.mxu0 0.0
        %975 = vmatmul.mubr.f32.gmra.mxu0 %v381
        %v976 = vpop.f32.mrf.mxu0
        %v977 = vadd.f32 0.0, %v976
        %v978 = vpop.f32.mrf.mxu0
        %979 = vdwg.mxu0
        %980 = vmatprep.subr.mxu0 0.0
        %981 = vmatpush1.msra.mxu0 %v857
        %982 = vmatprep.subr.mxu0 0.0
        %983 = vmatpush1.msra.mxu0 %v856
        %984 = vmatprep.subr.mxu0 0.0
        %985 = vmatpush1.msra.mxu0 %v855
        %986 = vmatprep.subr.mxu0 0.0
        %987 = vmatpush1.msra.mxu0 %v854
        %988 = vmatprep.subr.mxu0 0.0
        %989 = vmatpush1.msra.mxu0 %v853
        %990 = vmatprep.subr.mxu0 0.0
        %991 = vmatpush1.msra.mxu0 %v852
        %992 = vmatprep.subr.mxu0 0.0
        %993 = vmatpush1.msra.mxu0 %v851
        %994 = vmatprep.subr.mxu0 0.0
        %995 = vmatpush1.msra.mxu0 %v850
        %996 = vmatprep.subr.mxu0 0.0
        %997 = vmatpush1.msra.mxu0 %v849
        %998 = vmatprep.subr.mxu0 0.0
        %999 = vmatpush1.msra.mxu0 %v848
        %1000 = vmatprep.subr.mxu0 0.0
        %1001 = vmatpush1.msra.mxu0 %v847
        %1002 = vmatprep.subr.mxu0 0.0
        %1003 = vmatpush1.msra.mxu0 %v846
        %1004 = vmatprep.subr.mxu0 0.0
        %1005 = vmatpush1.msra.mxu0 %v845
        %1006 = vmatprep.subr.mxu0 0.0
        %1007 = vmatpush1.msra.mxu0 %v844
        %1008 = vmatprep.subr.mxu0 0.0
        %1009 = vmatpush1.msra.mxu0 %v843
        %1010 = vmatprep.subr.mxu0 0.0
        %1011 = vmatpush1.msra.mxu0 %v842
        %1012 = vmatprep.subr.mxu0 0.0
        %1013 = vmatpush2.msra.mxu0 0.0
        %1014 = vmatprep.subr.mxu0 0.0
        %1015 = vmatpush2.msra.mxu0 0.0
        %1016 = vmatprep.subr.mxu0 0.0
        %1017 = vmatpush2.msra.mxu0 0.0
        %1018 = vmatprep.subr.mxu0 0.0
        %1019 = vmatpush2.msra.mxu0 0.0
        %1020 = vmatprep.subr.mxu0 0.0
        %1021 = vmatpush2.msra.mxu0 0.0
        %1022 = vmatprep.subr.mxu0 0.0
        %1023 = vmatpush2.msra.mxu0 0.0
        %1024 = vmatprep.subr.mxu0 0.0
        %1025 = vmatpush2.msra.mxu0 0.0
        %1026 = vmatprep.subr.mxu0 0.0
        %1027 = vmatpush2.msra.mxu0 0.0
        %1028 = vmatprep.subr.mxu0 0.0
        %1029 = vmatpush2.msra.mxu0 0.0
        %1030 = vmatprep.subr.mxu0 0.0
        %1031 = vmatpush2.msra.mxu0 0.0
        %1032 = vmatprep.subr.mxu0 0.0
        %1033 = vmatpush2.msra.mxu0 0.0
        %1034 = vmatprep.subr.mxu0 0.0
        %1035 = vmatpush2.msra.mxu0 0.0
        %1036 = vmatprep.subr.mxu0 0.0
        %1037 = vmatpush2.msra.mxu0 0.0
        %1038 = vmatprep.subr.mxu0 0.0
        %1039 = vmatpush2.msra.mxu0 0.0
        %1040 = vmatprep.subr.mxu0 0.0
        %1041 = vmatpush2.msra.mxu0 0.0
        %1042 = vmatprep.subr.mxu0 0.0
        %1043 = vmatpush2.msra.mxu0 0.0
        %1044 = vmatprep.mubr.f32.mxu0 0.0
        %1045 = vmatmul.mubr.f32.gmra.mxu0 %v382
        %v1046 = vpop.f32.mrf.mxu0
        %v1047 = vadd.f32 %v942, %v1046
        %v1048 = vpop.f32.mrf.mxu0
        %1049 = vmatprep.mubr.f32.mxu0 0.0
        %1050 = vmatmul.mubr.f32.gmra.mxu0 %v383
        %v1051 = vpop.f32.mrf.mxu0
        %v1052 = vadd.f32 %v947, %v1051
        %v1053 = vpop.f32.mrf.mxu0
        %1054 = vmatprep.mubr.f32.mxu0 0.0
        %1055 = vmatmul.mubr.f32.gmra.mxu0 %v384
        %v1056 = vpop.f32.mrf.mxu0
        %v1057 = vadd.f32 %v952, %v1056
        %v1058 = vpop.f32.mrf.mxu0
        %1059 = vmatprep.mubr.f32.mxu0 0.0
        %1060 = vmatmul.mubr.f32.gmra.mxu0 %v385
        %v1061 = vpop.f32.mrf.mxu0
        %v1062 = vadd.f32 %v957, %v1061
        %v1063 = vpop.f32.mrf.mxu0
        %1064 = vmatprep.mubr.f32.mxu0 0.0
        %1065 = vmatmul.mubr.f32.gmra.mxu0 %v386
        %v1066 = vpop.f32.mrf.mxu0
        %v1067 = vadd.f32 %v962, %v1066
        %v1068 = vpop.f32.mrf.mxu0
        %1069 = vmatprep.mubr.f32.mxu0 0.0
        %1070 = vmatmul.mubr.f32.gmra.mxu0 %v387
        %v1071 = vpop.f32.mrf.mxu0
        %v1072 = vadd.f32 %v967, %v1071
        %v1073 = vpop.f32.mrf.mxu0
        %1074 = vmatprep.mubr.f32.mxu0 0.0
        %1075 = vmatmul.mubr.f32.gmra.mxu0 %v388
        %v1076 = vpop.f32.mrf.mxu0
        %v1077 = vadd.f32 %v972, %v1076
        %v1078 = vpop.f32.mrf.mxu0
        %1079 = vmatprep.mubr.f32.mxu0 0.0
        %1080 = vmatmul.mubr.f32.gmra.mxu0 %v389
        %v1081 = vpop.f32.mrf.mxu0
        %v1082 = vadd.f32 %v977, %v1081
        %v1083 = vpop.f32.mrf.mxu0
        %1084 = vdwg.mxu0
        %v1085 = vlaneseq
        %v1086 = vshrl.u32 %v1085, 7
        %v1087 = vsub.s32 0, %v1086
        %v1088 = vrot.slane %v537, %v1087
        %v1089 = vadd.f32 %v1047, %v1088
        %v1090 = vadd.f32 %v1052, %v1088
        %v1091 = vadd.f32 %v1057, %v1088
        %v1092 = vadd.f32 %v1062, %v1088
        %v1093 = vadd.f32 %v1067, %v1088
        %v1094 = vadd.f32 %v1072, %v1088
        %v1095 = vadd.f32 %v1077, %v1088
        %v1096 = vadd.f32 %v1082, %v1088
        %v1097 = vxor.u32 %v1089, 2147483648
        %v1098 = vxor.u32 %v1090, 2147483648
        %v1099 = vxor.u32 %v1091, 2147483648
        %v1100 = vxor.u32 %v1092, 2147483648
        %v1101 = vxor.u32 %v1093, 2147483648
        %v1102 = vxor.u32 %v1094, 2147483648
        %v1103 = vxor.u32 %v1095, 2147483648
        %v1104 = vxor.u32 %v1096, 2147483648
        %v1105 = vmul.f32 %v1097, 1.442695
        %v1106 = vpow.pop %v1105
        %v1107 = vmul.f32 %v1098, 1.442695
        %v1108 = vpow.pop %v1107
        %v1109 = vmul.f32 %v1099, 1.442695
        %v1110 = vpow.pop %v1109
        %v1111 = vmul.f32 %v1100, 1.442695
        %v1112 = vpow.pop %v1111
        %v1113 = vmul.f32 %v1101, 1.442695
        %v1114 = vpow.pop %v1113
        %v1115 = vmul.f32 %v1102, 1.442695
        %v1116 = vpow.pop %v1115
        %v1117 = vmul.f32 %v1103, 1.442695
        %v1118 = vpow.pop %v1117
        %v1119 = vmul.f32 %v1104, 1.442695
        %v1120 = vpow.pop %v1119
        %v1121 = vadd.f32 %v1106, 1.0
        %v1122 = vadd.f32 %v1108, 1.0
        %v1123 = vadd.f32 %v1110, 1.0
        %v1124 = vadd.f32 %v1112, 1.0
        %v1125 = vadd.f32 %v1114, 1.0
        %v1126 = vadd.f32 %v1116, 1.0
        %v1127 = vadd.f32 %v1118, 1.0
        %v1128 = vadd.f32 %v1120, 1.0
        %v1129 = vrcp.pop %v1121
        %v1130 = vmul.f32 1.0, %v1129
        %v1131 = vrcp.pop %v1122
        %v1132 = vmul.f32 1.0, %v1131
        %v1133 = vrcp.pop %v1123
        %v1134 = vmul.f32 1.0, %v1133
        %v1135 = vrcp.pop %v1124
        %v1136 = vmul.f32 1.0, %v1135
        %v1137 = vrcp.pop %v1125
        %v1138 = vmul.f32 1.0, %v1137
        %v1139 = vrcp.pop %v1126
        %v1140 = vmul.f32 1.0, %v1139
        %v1141 = vrcp.pop %v1127
        %v1142 = vmul.f32 1.0, %v1141
        %v1143 = vrcp.pop %v1128
        %v1144 = vmul.f32 1.0, %v1143
        %v1145 = vmul.f32 %v528, %v826
        %v1146 = vmul.f32 %v529, %v828
        %v1147 = vmul.f32 %v530, %v830
        %v1148 = vmul.f32 %v531, %v832
        %v1149 = vmul.f32 %v532, %v834
        %v1150 = vmul.f32 %v533, %v836
        %v1151 = vmul.f32 %v534, %v838
        %v1152 = vmul.f32 %v535, %v840
        %v1153 = vmul.f32 %v382, %v1130
        %v1154 = vmul.f32 %v383, %v1132
        %v1155 = vmul.f32 %v384, %v1134
        %v1156 = vmul.f32 %v385, %v1136
        %v1157 = vmul.f32 %v386, %v1138
        %v1158 = vmul.f32 %v387, %v1140
        %v1159 = vmul.f32 %v388, %v1142
        %v1160 = vmul.f32 %v389, %v1144
        %v1161 = vsub.f32 %v1145, %v1153
        %v1162 = vsub.f32 %v1146, %v1154
        %v1163 = vsub.f32 %v1147, %v1155
        %v1164 = vsub.f32 %v1148, %v1156
        %v1165 = vsub.f32 %v1149, %v1157
        %v1166 = vsub.f32 %v1150, %v1158
        %v1167 = vsub.f32 %v1151, %v1159
        %v1168 = vsub.f32 %v1152, %v1160
        %v1169 = vadd.f32 %v1161, %v1162
        %v1170 = vadd.f32 %v1169, %v1163
        %v1171 = vadd.f32 %v1170, %v1164
        %v1172 = vadd.f32 %v1171, %v1165
        %v1173 = vadd.f32 %v1172, %v1166
        %v1174 = vadd.f32 %v1173, %v1167
        %v1175 = vadd.f32 %v1174, %v1168
        %v1176 = vrot.slane %v1175, 4
        %v1177 = vadd.f32 %v1175, %v1176
        %v1178 = vrot.slane %v1177, 2
        %v1179 = vadd.f32 %v1177, %v1178
        %v1180 = vrot.slane %v1179, 1
        %v1181 = vadd.f32 %v1179, %v1180
        %1182 = vrot.lane.b32.xlu0 %v1181, 32
        %v1183 = vpop.permute.xlu0 %1182
        %v1184 = vadd.f32 %v1181, %v1183
        %1185 = vrot.lane.b32.xlu0 %v1181, 64
        %v1186 = vpop.permute.xlu0 %1185
        %v1187 = vadd.f32 %v1184, %v1186
        %1188 = vrot.lane.b32.xlu0 %v1181, 96
        %v1189 = vpop.permute.xlu0 %1188
        %v1190 = vadd.f32 %v1187, %v1189
        %v1191 = vmul.f32 %v1190, 0.00390625
        %v1192 = vxor.u32 %v1191, 2147483648
        %v1193 = vmul.f32 %v1192, 1.442695
        %v1194 = vpow.pop %v1193
        %v1195 = vadd.f32 %v1194, 1.0
        %v1196 = vrcp.pop %v1195
        %v1197 = vmul.f32 1.0, %v1196
        %v1198 = vlaneseq
        %v1199 = vshrl.u32 %v1198, 7
        %v1200 = vsub.s32 0, %v1199
        %v1201 = vrot.slane %v1197, %v1200
        %v1202 = vmul.f32 %v1201, %v1161
        %v1203 = vmul.f32 %v1201, %v1162
        %v1204 = vmul.f32 %v1201, %v1163
        %v1205 = vmul.f32 %v1201, %v1164
        %v1206 = vmul.f32 %v1201, %v1165
        %v1207 = vmul.f32 %v1201, %v1166
        %v1208 = vmul.f32 %v1201, %v1167
        %v1209 = vmul.f32 %v1201, %v1168
        %v1210 = vadd.f32 %v1153, %v1202
        %v1211 = vadd.f32 %v1154, %v1203
        %v1212 = vadd.f32 %v1155, %v1204
        %v1213 = vadd.f32 %v1156, %v1205
        %v1214 = vadd.f32 %v1157, %v1206
        %v1215 = vadd.f32 %v1158, %v1207
        %v1216 = vadd.f32 %v1159, %v1208
        %v1217 = vadd.f32 %v1160, %v1209
        %1218 = vst [vmem:[%s373] sm:$0xff] %v1210
        %1219 = vst [vmem:[%s373 + $0x8] sm:$0xff] %v1211
        %1220 = vst [vmem:[%s373 + $0x10] sm:$0xff] %v1212
        %1221 = vst [vmem:[%s373 + $0x18] sm:$0xff] %v1213
        %1222 = vst [vmem:[%s373 + $0x20] sm:$0xff] %v1214
        %1223 = vst [vmem:[%s373 + $0x28] sm:$0xff] %v1215
        %1224 = vst [vmem:[%s373 + $0x30] sm:$0xff] %v1216
        %1225 = vst [vmem:[%s373 + $0x38] sm:$0xff] %v1217
        %s1226 = sand.u32 %s176, 1
        %s1227 = scalar_lea.sflag [#allocation4], %s1226
        %s1228 = sand.u32 %s176, 1
        %s1229 = smul.addr %s1228, 64
        %s1230 = scalar_lea.vmem [#allocation11], %s1229
        // Predicated region
        $region65: #{tpu_custom_call.1} parent=43 // pred_check
          %p1231 = pneg %p186
        $region66: #{tpu_custom_call.1} parent=43 // pred_check_branch
          %1233 = sbr.rel (%p1231) target = $region68
        $region67: #{tpu_custom_call.1} parent=43 // pred_region
          %s1235 = ssub.s32 1024, 1024
          %1236 = vsyncadd %s1227, %s1235
          %s1237 = smul.addr %s27, 8
          %s1238 = smul.addr %s1237, 128
          %s1239 = scalar_lea.hbm %s6, %s1238
          %s1240 = sshll.u32 %s1230, 4
          %s1241 = int_to_ptr.vmem [resolvable:$true] %s1240
          %1246 = dma.vmem_to_hbm [thread:$0]  %s1241, 1024, %s1239, %s1227, 128, 128, 8
        $region68: #{tpu_custom_call.1} parent=43 // pred_fallthru
          _
      $region44: #{tpu_custom_call.1} parent=5 // pred_fallthru
        _
      %p1247 = scmp.le.s32.totalorder 2, %s22
      // Predicated region
      $region69: #{tpu_custom_call.1} parent=5 // pred_check
        %p1248 = pneg %p1247
      $region70: #{tpu_custom_call.1} parent=5 // pred_check_branch
        %1250 = sbr.rel (%p1248) target = $region72
      $region71: #{tpu_custom_call.1} parent=5 // pred_region
        %s1251 = ssub.s32 %s22, 2
        // Predicated region
        $region73: #{tpu_custom_call.1} parent=71 // pred_check
          %p1252 = pneg %p192
        $region74: #{tpu_custom_call.1} parent=71 // pred_check_branch
          %1254 = sbr.rel (%p1252) target = $region76
        $region75: #{tpu_custom_call.1} parent=71 // pred_region
          %s1255 = sand.u32 %s177, 1
          %s1256 = scalar_lea.sflag [#allocation4], %s1255
          %s1257 = sand.u32 %s177, 1
          %s1258 = smul.addr %s1257, 64
          %s1259 = scalar_lea.vmem [#allocation11], %s1258
          %1260 = dma.done %s1256, 1024
        $region76: #{tpu_custom_call.1} parent=71 // pred_fallthru
          _
      $region72: #{tpu_custom_call.1} parent=5 // pred_fallthru
        _
    $region6: #{tpu_custom_call.1} parent=1 // loop_footer
      %s26 = sadd.s32 1, %s22
    $region7: #{tpu_custom_call.1} parent=1 // loop_footer_branch
      %21 = sbr.rel target = $region3
    $region8: #{tpu_custom_call.1} parent=1 // loop_exit
      _
    %1261 = vsyncpa [#allocation3], 1
    %s1262 = scalar_lea.sflag [#allocation3], 1
    %1263 = vsyncpa %s1262, 1
    %1264 = vsyncpa [#allocation6], 1
    %s1265 = scalar_lea.sflag [#allocation6], 1
    %1266 = vsyncpa %s1265, 1
    %1267 = vsyncpa [#allocation9], 1
    %1268 = vsyncpa [#allocation4], 1
    %s1269 = scalar_lea.sflag [#allocation4], 1
    %1270 = vsyncpa %s1269, 1

</llo_original>
